<compile_context>
chip_gen: v7x
topology: tpu7x:2x2x1
jax: 0.10.0
libtpu: 0.0.40
codegen_flags: <defaults>
</compile_context>

<pallas_src>
import functools
import math

import jax
import jax.numpy as jnp
from jax.experimental import pallas as pl
from jax.experimental.pallas import tpu as pltpu

EPS = 1e-6
_BF16 = jnp.bfloat16
_F32 = jnp.float32


def _round_up(a, b):
    return (a + b - 1) // b * b


# --------------------------- LayerNorm helpers ---------------------------
def _ln_kernel(x, alpha, bias, eps=EPS):
    """Custom LayerNormalization (unbiased std, eps added to std); divide on EUP."""
    mean = jnp.mean(x, axis=-1, keepdims=True)
    d = x - mean
    var = jnp.sum(d * d, axis=-1, keepdims=True) / (x.shape[-1] - 1)
    inv = pl.reciprocal(jnp.sqrt(var) + eps, approx=True)
    return alpha * d * inv + bias


def _ln_ref(x, alpha, bias, eps=EPS):
    mean = jnp.mean(x, axis=-1, keepdims=True)
    d = x - mean
    var = jnp.sum(d * d, axis=-1, keepdims=True) / (x.shape[-1] - 1)
    return alpha * d / (jnp.sqrt(var) + eps) + bias


# --------------------------- patch projection (tiled over rows) ---------------------------
def _patch_proj_kernel(p_ref, w_ref, b_ref, o_ref):
    o_ref[...] = (
        jnp.dot(p_ref[...].astype(_BF16), w_ref[...], preferred_element_type=_F32)
        + b_ref[...]
    )


def patch_proj(patches_mat, w_bf16, b_row):
    M, K = patches_mat.shape
    D = w_bf16.shape[1]
    tm = _round_up(M, 8) if M <= 512 else 512
    m_pad = _round_up(M, tm)
    if m_pad != M:
        patches_mat = jnp.pad(patches_mat, ((0, m_pad - M), (0, 0)))
    out = pl.pallas_call(
        _patch_proj_kernel,
        out_shape=jax.ShapeDtypeStruct((m_pad, D), _F32),
        grid=(m_pad // tm,),
        in_specs=[
            pl.BlockSpec((tm, K), lambda i: (i, 0)),
            pl.BlockSpec((K, D), lambda i: (0, 0)),
            pl.BlockSpec((1, D), lambda i: (0, 0)),
        ],
        out_specs=pl.BlockSpec((tm, D), lambda i: (i, 0)),
        compiler_params=pltpu.CompilerParams(dimension_semantics=("parallel",)),
    )(patches_mat, w_bf16, b_row)
    return out[:M]


# --------------------------- encoder stack kernel (all layers, one call) ---------------------------
def _encoder_kernel(num_heads, s_real,
                    x_ref, wqkv_ref, bqkv_ref, wo_ref, bo_ref,
                    w1_ref, b1_ref, w2_ref, b2_ref, ln_ref,
                    o_ref, seq_ref):
    Bc, S_pad, D = x_ref.shape
    M = Bc * S_pad
    dk = D // num_heads
    scale = 1.0 / math.sqrt(dk)
    l = pl.program_id(1)

    # Load the input sequence into the resident VMEM scratch once per batch chunk.
    @pl.when(l == 0)
    def _():
        seq_ref[...] = x_ref[...].reshape(M, D)

    x = seq_ref[...]  # (M, D) fp32 residual stream

    # Key-padding mask (static decision; padded keys get a large negative bias).
    if S_pad > s_real:
        key_ids = jax.lax.broadcasted_iota(jnp.int32, (1, 1, S_pad), 2)
        mask_bias = jnp.where(key_ids >= s_real, _F32(-1e30), _F32(0.0))
    else:
        mask_bias = None

    # ---- residual 1: pre-norm multi-head self-attention (fused QKV weight) ----
    xn = _ln_kernel(x, ln_ref[l, 0, 0], ln_ref[l, 0, 1])
    qkv = jnp.dot(xn.astype(_BF16), wqkv_ref[0],
                  preferred_element_type=_F32) + bqkv_ref[0]        # (M, 3D)
    q = qkv[:, 0 * D:1 * D].reshape(Bc, S_pad, D)
    k = qkv[:, 1 * D:2 * D].reshape(Bc, S_pad, D)
    v = qkv[:, 2 * D:3 * D].reshape(Bc, S_pad, D)

    wo = wo_ref[0]                                                  # (D, D) bf16
    attn = jnp.zeros((M, D), _F32)
    for h in range(num_heads):
        sl = slice(h * dk, (h + 1) * dk)
        qh = q[:, :, sl].astype(_BF16)
        kh = k[:, :, sl].astype(_BF16)
        vh = v[:, :, sl].astype(_BF16)
        s = jnp.einsum("bqd,bkd->bqk", qh, kh,
                       preferred_element_type=_F32) * scale
        if mask_bias is not None:
            s = s + mask_bias
        s = s - jnp.max(s, axis=-1, keepdims=True)
        p = jnp.exp(s)
        p = p * pl.reciprocal(jnp.sum(p, axis=-1, keepdims=True), approx=True)
        oh = jnp.einsum("bqk,bkd->bqd", p.astype(_BF16), vh,
                        preferred_element_type=_F32)
        # Fold the output projection into the head loop: no lane-axis concat.
        attn = attn + jnp.dot(oh.reshape(M, dk).astype(_BF16), wo[sl, :],
                              preferred_element_type=_F32)
    x = x + attn + bo_ref[0]

    # ---- residual 2: pre-norm feed-forward ----
    xn2 = _ln_kernel(x, ln_ref[l, 1, 0], ln_ref[l, 1, 1])
    h1 = jnp.maximum(
        jnp.dot(xn2.astype(_BF16), w1_ref[0], preferred_element_type=_F32)
        + b1_ref[0], 0.0)
    h2 = jnp.dot(h1.astype(_BF16), w2_ref[0],
                 preferred_element_type=_F32) + b2_ref[0]
    x = x + h2

    seq_ref[...] = x

    # Only the CLS slab (first o_ref.shape[1] rows of each sequence) is written
    # back to HBM — the ViT head never reads the other token positions.
    @pl.when(l == pl.num_programs(1) - 1)
    def _():
        o_ref[...] = x.reshape(Bc, S_pad, D)[:, :o_ref.shape[1], :]


def encoder_stack(x, st, *, num_heads, s_real):
    B, S_pad, D = x.shape
    L = st["wqkv"].shape[0]
    F = st["w1"].shape[2]
    out_rows = 8  # sublane-aligned CLS slab (S_pad is always >= 8)

    # Size-2 parallel batch split keeps both v7x TensorCores busy; harmless on v5e/v6e.
    b_split = 2 if (B >= 2 and B % 2 == 0) else 1
    Bc = B // b_split

    def wspec(shape):
        return pl.BlockSpec((1,) + shape, lambda c, l: (l, 0, 0))

    kernel = functools.partial(_encoder_kernel, num_heads, s_real)
    return pl.pallas_call(
        kernel,
        out_shape=jax.ShapeDtypeStruct((B, out_rows, D), _F32),
        grid=(b_split, L),
        in_specs=[
            pl.BlockSpec((Bc, S_pad, D), lambda c, l: (c, 0, 0)),   # x (DMA'd once per chunk)
            wspec((D, 3 * D)), wspec((1, 3 * D)),                   # wqkv, bqkv
            wspec((D, D)), wspec((1, D)),                           # wo, bo
            wspec((D, F)), wspec((1, F)),                           # w1, b1
            wspec((F, D)), wspec((1, D)),                           # w2, b2
            pl.BlockSpec(memory_space=pltpu.MemorySpace.SMEM),      # ln scalars (L, 2, 2)
        ],
        out_specs=pl.BlockSpec((Bc, out_rows, D), lambda c, l: (c, 0, 0)),
        scratch_shapes=[pltpu.VMEM((Bc * S_pad, D), _F32)],         # resident activations
        compiler_params=pltpu.CompilerParams(
            dimension_semantics=("parallel", "arbitrary"),
            vmem_limit_bytes=48 * 1024 * 1024,                      # < v7x 64 MiB physical
        ),
    )(x, st["wqkv"], st["bqkv"], st["wo"], st["bo"],
      st["w1"], st["b1"], st["w2"], st["b2"], st["ln"])


# --------------------------- head kernel (final norms + classifier) ---------------------------
def _head_kernel(cls_ref, ln_ref, wc_ref, bc_ref, o_ref):
    cls = cls_ref[...]                                    # (B, D)  CLS rows only
    cls = _ln_kernel(cls, ln_ref[0, 0], ln_ref[0, 1])     # encoder final norm
    cls = _ln_kernel(cls, ln_ref[1, 0], ln_ref[1, 1])     # ViT self.norm
    o_ref[...] = (
        jnp.dot(cls.astype(_BF16), wc_ref[...], preferred_element_type=_F32)
        + bc_ref[...]
    )


def vit_head(cls_rows, head_ln, wc, bc):
    B = cls_rows.shape[0]
    C = wc.shape[1]
    return pl.pallas_call(
        _head_kernel,
        out_shape=jax.ShapeDtypeStruct((B, C), _F32),
        in_specs=[
            pl.BlockSpec(memory_space=pltpu.MemorySpace.VMEM),
            pl.BlockSpec(memory_space=pltpu.MemorySpace.SMEM),
            pl.BlockSpec(memory_space=pltpu.MemorySpace.VMEM),
            pl.BlockSpec(memory_space=pltpu.MemorySpace.VMEM),
        ],
        out_specs=pl.BlockSpec(memory_space=pltpu.MemorySpace.VMEM),
    )(cls_rows, head_ln, wc, bc)


# --------------------------- full forward (glue in plain JAX) ---------------------------
def vit_forward(x, params, *, patch_size, num_heads):
    B, C, H, W = x.shape
    p = patch_size
    nph, npw = H // p, W // p
    N = nph * npw
    D = params["pos_embed"].shape[-1]
    assert D % num_heads == 0, "d_model must be divisible by num_heads"

    # conv2d(kernel=stride=p)  ==  matmul over flattened patches (order: C, pi, pj)
    patches = (
        x.reshape(B, C, nph, p, npw, p)
        .transpose(0, 2, 4, 1, 3, 5)
        .reshape(B * N, C * p * p)
    )
    proj = patch_proj(patches, params["patch_w"], params["patch_b"]).reshape(B, N, D)

    cls = jnp.broadcast_to(params["class_token"], (B, 1, D)).astype(_F32)
    seq = jnp.concatenate([cls, proj], axis=1) + params["pos_embed"]  # (B, N+1, D)

    # Pad sequence to a sublane multiple of 8; padded keys masked inside the kernel.
    s_real = N + 1
    s_pad = _round_up(s_real, 8)
    if s_pad != s_real:
        seq = jnp.pad(seq, ((0, 0), (0, s_pad - s_real), (0, 0)))

    cls_slab = encoder_stack(seq, params["stacked"], num_heads=num_heads, s_real=s_real)
    cls_vec = cls_slab[:, 0, :]                                       # (B, D) CLS rows
    return vit_head(cls_vec, params["head_ln"], params["cls_w"], params["cls_b"])


# --------------------------- pure-JAX reference (mirrors bf16 matmul casts) ---------------------------
def reference_forward(x, params, *, patch_size, num_heads):
    def mm(a, w):
        return jnp.dot(a.astype(_BF16), w.astype(_BF16), preferred_element_type=_F32)

    B, C, H, W = x.shape
    p = patch_size
    nph, npw = H // p, W // p
    N = nph * npw
    D = params["pos_embed"].shape[-1]
    dk = D // num_heads

    patches = (
        x.reshape(B, C, nph, p, npw, p)
        .transpose(0, 2, 4, 1, 3, 5)
        .reshape(B, N, C * p * p)
    )
    seq = mm(patches, params["patch_w"]) + params["patch_b"]
    cls = jnp.broadcast_to(params["class_token"], (B, 1, D)).astype(_F32)
    seq = jnp.concatenate([cls, seq], axis=1) + params["pos_embed"]

    st = params["stacked"]
    L = st["wqkv"].shape[0]
    for l in range(L):
        ln = st["ln"][l]
        xn = _ln_ref(seq, ln[0, 0], ln[0, 1])
        qkv = mm(xn, st["wqkv"][l]) + st["bqkv"][l]
        q, k, v = qkv[..., :D], qkv[..., D:2 * D], qkv[..., 2 * D:]
        split = lambda t: t.reshape(B, -1, num_heads, dk).transpose(0, 2, 1, 3)
        qh, kh, vh = split(q), split(k), split(v)
        s = jnp.einsum("bhqd,bhkd->bhqk", qh.astype(_BF16), kh.astype(_BF16),
                       preferred_element_type=_F32) / math.sqrt(dk)
        pr = jax.nn.softmax(s, axis=-1)
        attn = jnp.einsum("bhqk,bhkd->bhqd", pr.astype(_BF16), vh.astype(_BF16),
                          preferred_element_type=_F32)
        attn = attn.transpose(0, 2, 1, 3).reshape(B, -1, D)
        seq = seq + (mm(attn, st["wo"][l]) + st["bo"][l])
        xn2 = _ln_ref(seq, ln[1, 0], ln[1, 1])
        h1 = jnp.maximum(mm(xn2, st["w1"][l]) + st["b1"][l], 0.0)
        seq = seq + (mm(h1, st["w2"][l]) + st["b2"][l])

    c0 = _ln_ref(seq[:, 0], params["head_ln"][0, 0], params["head_ln"][0, 1])
    c0 = _ln_ref(c0, params["head_ln"][1, 0], params["head_ln"][1, 1])
    return mm(c0, params["cls_w"]) + params["cls_b"]


# --------------------------- deterministic parameter init ---------------------------
def init_params(key, *, img_size, patch_size, in_channels, d_model, num_classes,
                num_layers, d_ff):
    N = (img_size // patch_size) ** 2
    K = in_channels * patch_size * patch_size
    L, D, F = num_layers, d_model, d_ff
    ks = jax.random.split(key, 16)

    def nrm(k, shape, scale=0.02, dtype=_F32):
        return (scale * jax.random.normal(k, shape)).astype(dtype)

    params = {
        "patch_w": nrm(ks[0], (K, D), dtype=_BF16),
        "patch_b": nrm(ks[1], (1, D)),
        # torch inits class_token / pos_embed to zeros; randomized to exercise the path
        "class_token": nrm(ks[2], (1, 1, D)),
        "pos_embed": nrm(ks[3], (1, N + 1, D)),
        "head_ln": jnp.array([[1.0, 0.0], [1.0, 0.0]], _F32),   # [enc_ln; vit_ln] = [alpha, bias]
        "cls_w": nrm(ks[4], (D, num_classes), dtype=_BF16),
        "cls_b": nrm(ks[5], (1, num_classes)),
        "stacked": {
            "wqkv": nrm(ks[6], (L, D, 3 * D), dtype=_BF16),
            "bqkv": nrm(ks[7], (L, 1, 3 * D)),
            "wo":   nrm(ks[8], (L, D, D), dtype=_BF16),
            "bo":   nrm(ks[9], (L, 1, D)),
            "w1":   nrm(ks[10], (L, D, F), dtype=_BF16),
            "b1":   nrm(ks[11], (L, 1, F)),
            "w2":   nrm(ks[12], (L, F, D), dtype=_BF16),
            "b2":   nrm(ks[13], (L, 1, D)),
            "ln":   jnp.tile(jnp.array([[[1.0, 0.0], [1.0, 0.0]]], _F32), (L, 1, 1)),
        },
    }
    return params


if __name__ == "__main__":
    IMG, PATCH, CIN = 16, 4, 4
    DMODEL, NCLASSES = 32, 10
    NLAYERS, NHEADS, DFF = 2, 4, 64
    B = 2

    key = jax.random.PRNGKey(0)
    kx, kp = jax.random.split(key)
    x = jax.random.normal(kx, (B, CIN, IMG, IMG), _F32)
    params = init_params(kp, img_size=IMG, patch_size=PATCH, in_channels=CIN,
                         d_model=DMODEL, num_classes=NCLASSES,
                         num_layers=NLAYERS, d_ff=DFF)

    fwd = jax.jit(functools.partial(vit_forward, patch_size=PATCH, num_heads=NHEADS))
    logits = jax.block_until_ready(fwd(x, params))

    ref = reference_forward(x, params, patch_size=PATCH, num_heads=NHEADS)
    assert logits.shape == (B, NCLASSES)
    err = float(jnp.max(jnp.abs(logits - ref)))
    # bf16 matmuls are mirrored in the reference; residual error is the approx EUP reciprocal.
    assert err < 2e-2, f"max abs err {err}"

    print("KERNEL_OK")
</pallas_src>

<mosaic_0001>
module attributes {stable_mosaic.version = 11 : i64} {
  func.func @_patch_proj_kernel(%arg0: i32, %arg1: memref<32x64xf32, #tpu.memory_space<vmem>>, %arg2: memref<64x32xbf16, #tpu.memory_space<vmem>>, %arg3: memref<1x32xf32, #tpu.memory_space<vmem>>, %arg4: memref<32x32xf32, #tpu.memory_space<vmem>>) attributes {dimension_semantics = [#tpu.dimension_semantics<parallel>], iteration_bounds = array<i64: 1>, scalar_prefetch = 0 : i64, scratch_operands = 0 : i64, tpu.core_type = #tpu.core_type<tc>, window_params = [{transform_indices = @transform_0, window_bounds = array<i64: 32, 64>}, {pipeline_mode = #tpu.pipeline_mode<synchronous>, transform_indices = @transform_1, window_bounds = array<i64: 64, 32>}, {pipeline_mode = #tpu.pipeline_mode<synchronous>, transform_indices = @transform_2, window_bounds = array<i64: 1, 32>}, {transform_indices = @transform_3, window_bounds = array<i64: 32, 32>}]} {
    %c0 = arith.constant 0 : index
    %c0_0 = arith.constant 0 : index
    %0 = vector.load %arg1[%c0, %c0_0] : memref<32x64xf32, #tpu.memory_space<vmem>>, vector<32x64xf32>
    %1 = arith.truncf %0 : vector<32x64xf32> to vector<32x64xbf16>
    %c0_1 = arith.constant 0 : index
    %c0_2 = arith.constant 0 : index
    %2 = vector.load %arg2[%c0_1, %c0_2] : memref<64x32xbf16, #tpu.memory_space<vmem>>, vector<64x32xbf16>
    %cst = arith.constant dense<0.000000e+00> : vector<32x32xf32>
    %3 = tpu.matmul %1, %2, %cst {dimension_numbers = #tpu.dot_dimension_numbers<[1], [0], [0], [1], [0, 0, 1, 1], [], []>} : vector<32x64xbf16>, vector<64x32xbf16>, vector<32x32xf32> -> vector<32x32xf32>
    %c0_3 = arith.constant 0 : index
    %c0_4 = arith.constant 0 : index
    %4 = vector.load %arg3[%c0_3, %c0_4] : memref<1x32xf32, #tpu.memory_space<vmem>>, vector<1x32xf32>
    %5 = vector.broadcast %4 : vector<1x32xf32> to vector<32x32xf32>
    %6 = arith.addf %3, %5 : vector<32x32xf32>
    %c0_5 = arith.constant 0 : index
    %c0_6 = arith.constant 0 : index
    %7 = vector.load %arg4[%c0_5, %c0_6] : memref<32x32xf32, #tpu.memory_space<vmem>>, vector<32x32xf32>
    tpu.vector_store %arg4[%c0_5, %c0_6], %6 {strides = array<i32>} : memref<32x32xf32, #tpu.memory_space<vmem>>, vector<32x32xf32>,
    return
  }
  func.func @transform_0(%arg0: i32) -> (i32, i32) {
    %c0_i32 = arith.constant 0 : i32
    %c0_i32_0 = arith.constant 0 : i32
    return %arg0, %c0_i32 : i32, i32
  }
  func.func @transform_1(%arg0: i32) -> (i32, i32) {
    %c0_i32 = arith.constant 0 : i32
    %c0_i32_0 = arith.constant 0 : i32
    %c0_i32_1 = arith.constant 0 : i32
    return %c0_i32, %c0_i32_0 : i32, i32
  }
  func.func @transform_2(%arg0: i32) -> (i32, i32) {
    %c0_i32 = arith.constant 0 : i32
    %c0_i32_0 = arith.constant 0 : i32
    %c0_i32_1 = arith.constant 0 : i32
    return %c0_i32, %c0_i32_0 : i32, i32
  }
  func.func @transform_3(%arg0: i32) -> (i32, i32) {
    %c0_i32 = arith.constant 0 : i32
    %c0_i32_0 = arith.constant 0 : i32
    return %arg0, %c0_i32 : i32, i32
  }
}

module attributes {stable_mosaic.version = 11 : i64} {
  func.func @_encoder_kernel(%arg0: i32, %arg1: i32, %arg2: memref<1x24x32xf32, #tpu.memory_space<vmem>>, %arg3: memref<1x32x96xbf16, #tpu.memory_space<vmem>>, %arg4: memref<1x1x96xf32, #tpu.memory_space<vmem>>, %arg5: memref<1x32x32xbf16, #tpu.memory_space<vmem>>, %arg6: memref<1x1x32xf32, #tpu.memory_space<vmem>>, %arg7: memref<1x32x64xbf16, #tpu.memory_space<vmem>>, %arg8: memref<1x1x64xf32, #tpu.memory_space<vmem>>, %arg9: memref<1x64x32xbf16, #tpu.memory_space<vmem>>, %arg10: memref<1x1x32xf32, #tpu.memory_space<vmem>>, %arg11: memref<2x2x2xf32, #tpu.memory_space<smem>>, %arg12: memref<1x8x32xf32, #tpu.memory_space<vmem>>, %arg13: memref<24x32xf32, #tpu.memory_space<vmem>>) attributes {dimension_semantics = [#tpu.dimension_semantics<parallel>, #tpu.dimension_semantics<arbitrary>], iteration_bounds = array<i64: 2, 2>, scalar_prefetch = 0 : i64, scratch_operands = 1 : i64, tpu.core_type = #tpu.core_type<tc>, window_params = [{transform_indices = @transform_0, window_bounds = array<i64: 1, 24, 32>}, {transform_indices = @transform_1, window_bounds = array<i64: 1, 32, 96>}, {transform_indices = @transform_2, window_bounds = array<i64: 1, 1, 96>}, {transform_indices = @transform_3, window_bounds = array<i64: 1, 32, 32>}, {transform_indices = @transform_4, window_bounds = array<i64: 1, 1, 32>}, {transform_indices = @transform_5, window_bounds = array<i64: 1, 32, 64>}, {transform_indices = @transform_6, window_bounds = array<i64: 1, 1, 64>}, {transform_indices = @transform_7, window_bounds = array<i64: 1, 64, 32>}, {transform_indices = @transform_8, window_bounds = array<i64: 1, 1, 32>}, {transform_indices = @transform_9, window_bounds = array<i64: 2, 2, 2>}, {transform_indices = @transform_10, window_bounds = array<i64: 1, 8, 32>}]} {
    %c0_i32 = arith.constant 0 : i32
    %0 = arith.cmpi eq, %arg1, %c0_i32 : i32
    %1 = arith.extui %0 : i1 to i32
    %c0_i32_0 = arith.constant 0 : i32
    %2 = arith.cmpi ne, %1, %c0_i32_0 : i32
    scf.if %2 {
      %c0_76 = arith.constant 0 : index
      %c0_77 = arith.constant 0 : index
      %c0_78 = arith.constant 0 : index
      %217 = vector.load %arg2[%c0_76, %c0_77, %c0_78] : memref<1x24x32xf32, #tpu.memory_space<vmem>>, vector<1x24x32xf32>
      %218 = vector.shape_cast %217 : vector<1x24x32xf32> to vector<24x32xf32>
      %c0_79 = arith.constant 0 : index
      %c0_80 = arith.constant 0 : index
      %219 = vector.load %arg13[%c0_79, %c0_80] : memref<24x32xf32, #tpu.memory_space<vmem>>, vector<24x32xf32>
      tpu.vector_store %arg13[%c0_79, %c0_80], %218 {strides = array<i32>} : memref<24x32xf32, #tpu.memory_space<vmem>>, vector<24x32xf32>,
    } else {
    }
    %c0 = arith.constant 0 : index
    %c0_1 = arith.constant 0 : index
    %3 = vector.load %arg13[%c0, %c0_1] : memref<24x32xf32, #tpu.memory_space<vmem>>, vector<24x32xf32>
    %4 = tpu.iota {dimensions = array<i32: 2>} : vector<1x1x24xi32>
    %c17_i32 = arith.constant 17 : i32
    %5 = vector.broadcast %c17_i32 : i32 to vector<1x1x24xi32>
    %6 = arith.cmpi sge, %4, %5 : vector<1x1x24xi32>
    %cst = arith.constant -1.000000e+30 : f32
    %cst_2 = arith.constant 0.000000e+00 : f32
    %7 = vector.broadcast %cst : f32 to vector<1x1x24xf32>
    %8 = vector.broadcast %cst_2 : f32 to vector<1x1x24xf32>
    %9 = arith.select %6, %7, %8 : vector<1x1x24xi1>, vector<1x1x24xf32>
    %10 = arith.index_cast %arg1 : i32 to index
    %c0_3 = arith.constant 0 : index
    %c0_4 = arith.constant 0 : index
    %11 = memref.load %arg11[%10, %c0_3, %c0_4] : memref<2x2x2xf32, #tpu.memory_space<smem>>
    %12 = arith.index_cast %arg1 : i32 to index
    %c0_5 = arith.constant 0 : index
    %c1 = arith.constant 1 : index
    %13 = memref.load %arg11[%12, %c0_5, %c1] : memref<2x2x2xf32, #tpu.memory_space<smem>>
    %cst_6 = arith.constant dense<0.000000e+00> : vector<24xf32>
    %14 = vector.multi_reduction <add>, %3, %cst_6 [1] : vector<24x32xf32> to vector<24xf32>
    %15 = vector.shape_cast %14 : vector<24xf32> to vector<24x1xf32>
    %cst_7 = arith.constant 3.200000e+01 : f32
    %16 = vector.broadcast %cst_7 : f32 to vector<24x1xf32>
    %17 = arith.divf %15, %16 : vector<24x1xf32>
    %18 = vector.broadcast %17 : vector<24x1xf32> to vector<24x32xf32>
    %19 = arith.subf %3, %18 : vector<24x32xf32>
    %20 = arith.mulf %19, %19 : vector<24x32xf32>
    %cst_8 = arith.constant dense<0.000000e+00> : vector<24xf32>
    %21 = vector.multi_reduction <add>, %20, %cst_8 [1] : vector<24x32xf32> to vector<24xf32>
    %22 = vector.shape_cast %21 : vector<24xf32> to vector<24x1xf32>
    %cst_9 = arith.constant 3.100000e+01 : f32
    %23 = vector.broadcast %cst_9 : f32 to vector<24x1xf32>
    %24 = arith.divf %22, %23 : vector<24x1xf32>
    %25 = math.sqrt %24 : vector<24x1xf32>
    %cst_10 = arith.constant 9.99999997E-7 : f32
    %26 = vector.broadcast %cst_10 : f32 to vector<24x1xf32>
    %27 = arith.addf %25, %26 : vector<24x1xf32>
    %28 = tpu.reciprocal %27 {approx = true} : vector<24x1xf32> -> vector<24x1xf32>
    %29 = vector.broadcast %11 : f32 to vector<24x32xf32>
    %30 = arith.mulf %29, %19 : vector<24x32xf32>
    %31 = vector.broadcast %28 : vector<24x1xf32> to vector<24x32xf32>
    %32 = arith.mulf %30, %31 : vector<24x32xf32>
    %33 = vector.broadcast %13 : f32 to vector<24x32xf32>
    %34 = arith.addf %32, %33 : vector<24x32xf32>
    %35 = arith.truncf %34 : vector<24x32xf32> to vector<24x32xbf16>
    %c0_11 = arith.constant 0 : index
    %c0_12 = arith.constant 0 : index
    %c0_13 = arith.constant 0 : index
    %36 = vector.load %arg3[%c0_11, %c0_12, %c0_13] : memref<1x32x96xbf16, #tpu.memory_space<vmem>>, vector<1x32x96xbf16>
    %37 = vector.shape_cast %36 : vector<1x32x96xbf16> to vector<32x96xbf16>
    %cst_14 = arith.constant dense<0.000000e+00> : vector<24x96xf32>
    %38 = tpu.matmul %35, %37, %cst_14 {dimension_numbers = #tpu.dot_dimension_numbers<[1], [0], [0], [1], [0, 0, 1, 1], [], []>} : vector<24x32xbf16>, vector<32x96xbf16>, vector<24x96xf32> -> vector<24x96xf32>
    %c0_15 = arith.constant 0 : index
    %c0_16 = arith.constant 0 : index
    %c0_17 = arith.constant 0 : index
    %39 = vector.load %arg4[%c0_15, %c0_16, %c0_17] : memref<1x1x96xf32, #tpu.memory_space<vmem>>, vector<1x1x96xf32>
    %40 = vector.shape_cast %39 : vector<1x1x96xf32> to vector<1x96xf32>
    %41 = vector.broadcast %40 : vector<1x96xf32> to vector<24x96xf32>
    %42 = arith.addf %38, %41 : vector<24x96xf32>
    %43 = vector.extract_strided_slice %42 {offsets = [0, 0], sizes = [24, 32], strides = [1, 1]} : vector<24x96xf32> to vector<24x32xf32>
    %44 = vector.shape_cast %43 : vector<24x32xf32> to vector<1x24x32xf32>
    %45 = vector.extract_strided_slice %42 {offsets = [0, 32], sizes = [24, 32], strides = [1, 1]} : vector<24x96xf32> to vector<24x32xf32>
    %46 = vector.shape_cast %45 : vector<24x32xf32> to vector<1x24x32xf32>
    %47 = vector.extract_strided_slice %42 {offsets = [0, 64], sizes = [24, 32], strides = [1, 1]} : vector<24x96xf32> to vector<24x32xf32>
    %48 = vector.shape_cast %47 : vector<24x32xf32> to vector<1x24x32xf32>
    %c0_18 = arith.constant 0 : index
    %c0_19 = arith.constant 0 : index
    %c0_20 = arith.constant 0 : index
    %49 = vector.load %arg5[%c0_18, %c0_19, %c0_20] : memref<1x32x32xbf16, #tpu.memory_space<vmem>>, vector<1x32x32xbf16>
    %50 = vector.shape_cast %49 : vector<1x32x32xbf16> to vector<32x32xbf16>
    %cst_21 = arith.constant 0.000000e+00 : f32
    %51 = vector.broadcast %cst_21 : f32 to vector<24x32xf32>
    %52 = vector.extract_strided_slice %44 {offsets = [0, 0, 0], sizes = [1, 24, 8], strides = [1, 1, 1]} : vector<1x24x32xf32> to vector<1x24x8xf32>
    %53 = arith.truncf %52 : vector<1x24x8xf32> to vector<1x24x8xbf16>
    %54 = vector.extract_strided_slice %46 {offsets = [0, 0, 0], sizes = [1, 24, 8], strides = [1, 1, 1]} : vector<1x24x32xf32> to vector<1x24x8xf32>
    %55 = arith.truncf %54 : vector<1x24x8xf32> to vector<1x24x8xbf16>
    %56 = vector.extract_strided_slice %48 {offsets = [0, 0, 0], sizes = [1, 24, 8], strides = [1, 1, 1]} : vector<1x24x32xf32> to vector<1x24x8xf32>
    %57 = arith.truncf %56 : vector<1x24x8xf32> to vector<1x24x8xbf16>
    "tpu.trace_start"() <{level = 10 : i32, message = "bqd,bkd->bqk"}> : () -> ()
    %cst_22 = arith.constant dense<0.000000e+00> : vector<1x24x24xf32>
    %58 = tpu.matmul %53, %55, %cst_22 {dimension_numbers = #tpu.dot_dimension_numbers<[2], [2], [1], [1], [0, 0, 0, 1, 1, 1], [0], [0]>} : vector<1x24x8xbf16>, vector<1x24x8xbf16>, vector<1x24x24xf32> -> vector<1x24x24xf32>
    "tpu.trace_stop"() : () -> ()
    %cst_23 = arith.constant 0.353553385 : f32
    %59 = vector.broadcast %cst_23 : f32 to vector<1x24x24xf32>
    %60 = arith.mulf %58, %59 : vector<1x24x24xf32>
    %61 = vector.broadcast %9 : vector<1x1x24xf32> to vector<1x24x24xf32>
    %62 = arith.addf %60, %61 : vector<1x24x24xf32>
    %cst_24 = arith.constant dense<0xFF800000> : vector<1x24xf32>
    %63 = vector.multi_reduction <maximumf>, %62, %cst_24 [2] : vector<1x24x24xf32> to vector<1x24xf32>
    %64 = vector.shape_cast %63 : vector<1x24xf32> to vector<1x24x1xf32>
    %65 = vector.broadcast %64 : vector<1x24x1xf32> to vector<1x24x24xf32>
    %66 = arith.subf %62, %65 : vector<1x24x24xf32>
    %67 = math.exp %66 : vector<1x24x24xf32>
    %cst_25 = arith.constant dense<0.000000e+00> : vector<1x24xf32>
    %68 = vector.multi_reduction <add>, %67, %cst_25 [2] : vector<1x24x24xf32> to vector<1x24xf32>
    %69 = vector.shape_cast %68 : vector<1x24xf32> to vector<1x24x1xf32>
    %70 = tpu.reciprocal %69 {approx = true} : vector<1x24x1xf32> -> vector<1x24x1xf32>
    %71 = vector.broadcast %70 : vector<1x24x1xf32> to vector<1x24x24xf32>
    %72 = arith.mulf %67, %71 : vector<1x24x24xf32>
    %73 = arith.truncf %72 : vector<1x24x24xf32> to vector<1x24x24xbf16>
    "tpu.trace_start"() <{level = 10 : i32, message = "bqk,bkd->bqd"}> : () -> ()
    %cst_26 = arith.constant dense<0.000000e+00> : vector<1x24x8xf32>
    %74 = tpu.matmul %73, %57, %cst_26 {dimension_numbers = #tpu.dot_dimension_numbers<[2], [1], [1], [2], [0, 0, 0, 1, 1, 2], [0], [0]>} : vector<1x24x24xbf16>, vector<1x24x8xbf16>, vector<1x24x8xf32> -> vector<1x24x8xf32>
    "tpu.trace_stop"() : () -> ()
    %75 = vector.shape_cast %74 : vector<1x24x8xf32> to vector<24x8xf32>
    %76 = arith.truncf %75 : vector<24x8xf32> to vector<24x8xbf16>
    %77 = vector.extract_strided_slice %50 {offsets = [0, 0], sizes = [8, 32], strides = [1, 1]} : vector<32x32xbf16> to vector<8x32xbf16>
    %cst_27 = arith.constant dense<0.000000e+00> : vector<24x32xf32>
    %78 = tpu.matmul %76, %77, %cst_27 {dimension_numbers = #tpu.dot_dimension_numbers<[1], [0], [0], [1], [0, 0, 1, 1], [], []>} : vector<24x8xbf16>, vector<8x32xbf16>, vector<24x32xf32> -> vector<24x32xf32>
    %79 = arith.addf %51, %78 : vector<24x32xf32>
    %80 = vector.extract_strided_slice %44 {offsets = [0, 0, 8], sizes = [1, 24, 8], strides = [1, 1, 1]} : vector<1x24x32xf32> to vector<1x24x8xf32>
    %81 = arith.truncf %80 : vector<1x24x8xf32> to vector<1x24x8xbf16>
    %82 = vector.extract_strided_slice %46 {offsets = [0, 0, 8], sizes = [1, 24, 8], strides = [1, 1, 1]} : vector<1x24x32xf32> to vector<1x24x8xf32>
    %83 = arith.truncf %82 : vector<1x24x8xf32> to vector<1x24x8xbf16>
    %84 = vector.extract_strided_slice %48 {offsets = [0, 0, 8], sizes = [1, 24, 8], strides = [1, 1, 1]} : vector<1x24x32xf32> to vector<1x24x8xf32>
    %85 = arith.truncf %84 : vector<1x24x8xf32> to vector<1x24x8xbf16>
    "tpu.trace_start"() <{level = 10 : i32, message = "bqd,bkd->bqk"}> : () -> ()
    %cst_28 = arith.constant dense<0.000000e+00> : vector<1x24x24xf32>
    %86 = tpu.matmul %81, %83, %cst_28 {dimension_numbers = #tpu.dot_dimension_numbers<[2], [2], [1], [1], [0, 0, 0, 1, 1, 1], [0], [0]>} : vector<1x24x8xbf16>, vector<1x24x8xbf16>, vector<1x24x24xf32> -> vector<1x24x24xf32>
    "tpu.trace_stop"() : () -> ()
    %cst_29 = arith.constant 0.353553385 : f32
    %87 = vector.broadcast %cst_29 : f32 to vector<1x24x24xf32>
    %88 = arith.mulf %86, %87 : vector<1x24x24xf32>
    %89 = vector.broadcast %9 : vector<1x1x24xf32> to vector<1x24x24xf32>
    %90 = arith.addf %88, %89 : vector<1x24x24xf32>
    %cst_30 = arith.constant dense<0xFF800000> : vector<1x24xf32>
    %91 = vector.multi_reduction <maximumf>, %90, %cst_30 [2] : vector<1x24x24xf32> to vector<1x24xf32>
    %92 = vector.shape_cast %91 : vector<1x24xf32> to vector<1x24x1xf32>
    %93 = vector.broadcast %92 : vector<1x24x1xf32> to vector<1x24x24xf32>
    %94 = arith.subf %90, %93 : vector<1x24x24xf32>
    %95 = math.exp %94 : vector<1x24x24xf32>
    %cst_31 = arith.constant dense<0.000000e+00> : vector<1x24xf32>
    %96 = vector.multi_reduction <add>, %95, %cst_31 [2] : vector<1x24x24xf32> to vector<1x24xf32>
    %97 = vector.shape_cast %96 : vector<1x24xf32> to vector<1x24x1xf32>
    %98 = tpu.reciprocal %97 {approx = true} : vector<1x24x1xf32> -> vector<1x24x1xf32>
    %99 = vector.broadcast %98 : vector<1x24x1xf32> to vector<1x24x24xf32>
    %100 = arith.mulf %95, %99 : vector<1x24x24xf32>
    %101 = arith.truncf %100 : vector<1x24x24xf32> to vector<1x24x24xbf16>
    "tpu.trace_start"() <{level = 10 : i32, message = "bqk,bkd->bqd"}> : () -> ()
    %cst_32 = arith.constant dense<0.000000e+00> : vector<1x24x8xf32>
    %102 = tpu.matmul %101, %85, %cst_32 {dimension_numbers = #tpu.dot_dimension_numbers<[2], [1], [1], [2], [0, 0, 0, 1, 1, 2], [0], [0]>} : vector<1x24x24xbf16>, vector<1x24x8xbf16>, vector<1x24x8xf32> -> vector<1x24x8xf32>
    "tpu.trace_stop"() : () -> ()
    %103 = vector.shape_cast %102 : vector<1x24x8xf32> to vector<24x8xf32>
    %104 = arith.truncf %103 : vector<24x8xf32> to vector<24x8xbf16>
    %105 = vector.extract_strided_slice %50 {offsets = [8, 0], sizes = [8, 32], strides = [1, 1]} : vector<32x32xbf16> to vector<8x32xbf16>
    %cst_33 = arith.constant dense<0.000000e+00> : vector<24x32xf32>
    %106 = tpu.matmul %104, %105, %cst_33 {dimension_numbers = #tpu.dot_dimension_numbers<[1], [0], [0], [1], [0, 0, 1, 1], [], []>} : vector<24x8xbf16>, vector<8x32xbf16>, vector<24x32xf32> -> vector<24x32xf32>
    %107 = arith.addf %79, %106 : vector<24x32xf32>
    %108 = vector.extract_strided_slice %44 {offsets = [0, 0, 16], sizes = [1, 24, 8], strides = [1, 1, 1]} : vector<1x24x32xf32> to vector<1x24x8xf32>
    %109 = arith.truncf %108 : vector<1x24x8xf32> to vector<1x24x8xbf16>
    %110 = vector.extract_strided_slice %46 {offsets = [0, 0, 16], sizes = [1, 24, 8], strides = [1, 1, 1]} : vector<1x24x32xf32> to vector<1x24x8xf32>
    %111 = arith.truncf %110 : vector<1x24x8xf32> to vector<1x24x8xbf16>
    %112 = vector.extract_strided_slice %48 {offsets = [0, 0, 16], sizes = [1, 24, 8], strides = [1, 1, 1]} : vector<1x24x32xf32> to vector<1x24x8xf32>
    %113 = arith.truncf %112 : vector<1x24x8xf32> to vector<1x24x8xbf16>
    "tpu.trace_start"() <{level = 10 : i32, message = "bqd,bkd->bqk"}> : () -> ()
    %cst_34 = arith.constant dense<0.000000e+00> : vector<1x24x24xf32>
    %114 = tpu.matmul %109, %111, %cst_34 {dimension_numbers = #tpu.dot_dimension_numbers<[2], [2], [1], [1], [0, 0, 0, 1, 1, 1], [0], [0]>} : vector<1x24x8xbf16>, vector<1x24x8xbf16>, vector<1x24x24xf32> -> vector<1x24x24xf32>
    "tpu.trace_stop"() : () -> ()
    %cst_35 = arith.constant 0.353553385 : f32
    %115 = vector.broadcast %cst_35 : f32 to vector<1x24x24xf32>
    %116 = arith.mulf %114, %115 : vector<1x24x24xf32>
    %117 = vector.broadcast %9 : vector<1x1x24xf32> to vector<1x24x24xf32>
    %118 = arith.addf %116, %117 : vector<1x24x24xf32>
    %cst_36 = arith.constant dense<0xFF800000> : vector<1x24xf32>
    %119 = vector.multi_reduction <maximumf>, %118, %cst_36 [2] : vector<1x24x24xf32> to vector<1x24xf32>
    %120 = vector.shape_cast %119 : vector<1x24xf32> to vector<1x24x1xf32>
    %121 = vector.broadcast %120 : vector<1x24x1xf32> to vector<1x24x24xf32>
    %122 = arith.subf %118, %121 : vector<1x24x24xf32>
    %123 = math.exp %122 : vector<1x24x24xf32>
    %cst_37 = arith.constant dense<0.000000e+00> : vector<1x24xf32>
    %124 = vector.multi_reduction <add>, %123, %cst_37 [2] : vector<1x24x24xf32> to vector<1x24xf32>
    %125 = vector.shape_cast %124 : vector<1x24xf32> to vector<1x24x1xf32>
    %126 = tpu.reciprocal %125 {approx = true} : vector<1x24x1xf32> -> vector<1x24x1xf32>
    %127 = vector.broadcast %126 : vector<1x24x1xf32> to vector<1x24x24xf32>
    %128 = arith.mulf %123, %127 : vector<1x24x24xf32>
    %129 = arith.truncf %128 : vector<1x24x24xf32> to vector<1x24x24xbf16>
    "tpu.trace_start"() <{level = 10 : i32, message = "bqk,bkd->bqd"}> : () -> ()
    %cst_38 = arith.constant dense<0.000000e+00> : vector<1x24x8xf32>
    %130 = tpu.matmul %129, %113, %cst_38 {dimension_numbers = #tpu.dot_dimension_numbers<[2], [1], [1], [2], [0, 0, 0, 1, 1, 2], [0], [0]>} : vector<1x24x24xbf16>, vector<1x24x8xbf16>, vector<1x24x8xf32> -> vector<1x24x8xf32>
    "tpu.trace_stop"() : () -> ()
    %131 = vector.shape_cast %130 : vector<1x24x8xf32> to vector<24x8xf32>
    %132 = arith.truncf %131 : vector<24x8xf32> to vector<24x8xbf16>
    %133 = vector.extract_strided_slice %50 {offsets = [16, 0], sizes = [8, 32], strides = [1, 1]} : vector<32x32xbf16> to vector<8x32xbf16>
    %cst_39 = arith.constant dense<0.000000e+00> : vector<24x32xf32>
    %134 = tpu.matmul %132, %133, %cst_39 {dimension_numbers = #tpu.dot_dimension_numbers<[1], [0], [0], [1], [0, 0, 1, 1], [], []>} : vector<24x8xbf16>, vector<8x32xbf16>, vector<24x32xf32> -> vector<24x32xf32>
    %135 = arith.addf %107, %134 : vector<24x32xf32>
    %136 = vector.extract_strided_slice %44 {offsets = [0, 0, 24], sizes = [1, 24, 8], strides = [1, 1, 1]} : vector<1x24x32xf32> to vector<1x24x8xf32>
    %137 = arith.truncf %136 : vector<1x24x8xf32> to vector<1x24x8xbf16>
    %138 = vector.extract_strided_slice %46 {offsets = [0, 0, 24], sizes = [1, 24, 8], strides = [1, 1, 1]} : vector<1x24x32xf32> to vector<1x24x8xf32>
    %139 = arith.truncf %138 : vector<1x24x8xf32> to vector<1x24x8xbf16>
    %140 = vector.extract_strided_slice %48 {offsets = [0, 0, 24], sizes = [1, 24, 8], strides = [1, 1, 1]} : vector<1x24x32xf32> to vector<1x24x8xf32>
    %141 = arith.truncf %140 : vector<1x24x8xf32> to vector<1x24x8xbf16>
    "tpu.trace_start"() <{level = 10 : i32, message = "bqd,bkd->bqk"}> : () -> ()
    %cst_40 = arith.constant dense<0.000000e+00> : vector<1x24x24xf32>
    %142 = tpu.matmul %137, %139, %cst_40 {dimension_numbers = #tpu.dot_dimension_numbers<[2], [2], [1], [1], [0, 0, 0, 1, 1, 1], [0], [0]>} : vector<1x24x8xbf16>, vector<1x24x8xbf16>, vector<1x24x24xf32> -> vector<1x24x24xf32>
    "tpu.trace_stop"() : () -> ()
    %cst_41 = arith.constant 0.353553385 : f32
    %143 = vector.broadcast %cst_41 : f32 to vector<1x24x24xf32>
    %144 = arith.mulf %142, %143 : vector<1x24x24xf32>
    %145 = vector.broadcast %9 : vector<1x1x24xf32> to vector<1x24x24xf32>
    %146 = arith.addf %144, %145 : vector<1x24x24xf32>
    %cst_42 = arith.constant dense<0xFF800000> : vector<1x24xf32>
    %147 = vector.multi_reduction <maximumf>, %146, %cst_42 [2] : vector<1x24x24xf32> to vector<1x24xf32>
    %148 = vector.shape_cast %147 : vector<1x24xf32> to vector<1x24x1xf32>
    %149 = vector.broadcast %148 : vector<1x24x1xf32> to vector<1x24x24xf32>
    %150 = arith.subf %146, %149 : vector<1x24x24xf32>
    %151 = math.exp %150 : vector<1x24x24xf32>
    %cst_43 = arith.constant dense<0.000000e+00> : vector<1x24xf32>
    %152 = vector.multi_reduction <add>, %151, %cst_43 [2] : vector<1x24x24xf32> to vector<1x24xf32>
    %153 = vector.shape_cast %152 : vector<1x24xf32> to vector<1x24x1xf32>
    %154 = tpu.reciprocal %153 {approx = true} : vector<1x24x1xf32> -> vector<1x24x1xf32>
    %155 = vector.broadcast %154 : vector<1x24x1xf32> to vector<1x24x24xf32>
    %156 = arith.mulf %151, %155 : vector<1x24x24xf32>
    %157 = arith.truncf %156 : vector<1x24x24xf32> to vector<1x24x24xbf16>
    "tpu.trace_start"() <{level = 10 : i32, message = "bqk,bkd->bqd"}> : () -> ()
    %cst_44 = arith.constant dense<0.000000e+00> : vector<1x24x8xf32>
    %158 = tpu.matmul %157, %141, %cst_44 {dimension_numbers = #tpu.dot_dimension_numbers<[2], [1], [1], [2], [0, 0, 0, 1, 1, 2], [0], [0]>} : vector<1x24x24xbf16>, vector<1x24x8xbf16>, vector<1x24x8xf32> -> vector<1x24x8xf32>
    "tpu.trace_stop"() : () -> ()
    %159 = vector.shape_cast %158 : vector<1x24x8xf32> to vector<24x8xf32>
    %160 = arith.truncf %159 : vector<24x8xf32> to vector<24x8xbf16>
    %161 = vector.extract_strided_slice %50 {offsets = [24, 0], sizes = [8, 32], strides = [1, 1]} : vector<32x32xbf16> to vector<8x32xbf16>
    %cst_45 = arith.constant dense<0.000000e+00> : vector<24x32xf32>
    %162 = tpu.matmul %160, %161, %cst_45 {dimension_numbers = #tpu.dot_dimension_numbers<[1], [0], [0], [1], [0, 0, 1, 1], [], []>} : vector<24x8xbf16>, vector<8x32xbf16>, vector<24x32xf32> -> vector<24x32xf32>
    %163 = arith.addf %135, %162 : vector<24x32xf32>
    %164 = arith.addf %3, %163 : vector<24x32xf32>
    %c0_46 = arith.constant 0 : index
    %c0_47 = arith.constant 0 : index
    %c0_48 = arith.constant 0 : index
    %165 = vector.load %arg6[%c0_46, %c0_47, %c0_48] : memref<1x1x32xf32, #tpu.memory_space<vmem>>, vector<1x1x32xf32>
    %166 = vector.shape_cast %165 : vector<1x1x32xf32> to vector<1x32xf32>
    %167 = vector.broadcast %166 : vector<1x32xf32> to vector<24x32xf32>
    %168 = arith.addf %164, %167 : vector<24x32xf32>
    %169 = arith.index_cast %arg1 : i32 to index
    %c1_49 = arith.constant 1 : index
    %c0_50 = arith.constant 0 : index
    %170 = memref.load %arg11[%169, %c1_49, %c0_50] : memref<2x2x2xf32, #tpu.memory_space<smem>>
    %171 = arith.index_cast %arg1 : i32 to index
    %c1_51 = arith.constant 1 : index
    %c1_52 = arith.constant 1 : index
    %172 = memref.load %arg11[%171, %c1_51, %c1_52] : memref<2x2x2xf32, #tpu.memory_space<smem>>
    %cst_53 = arith.constant dense<0.000000e+00> : vector<24xf32>
    %173 = vector.multi_reduction <add>, %168, %cst_53 [1] : vector<24x32xf32> to vector<24xf32>
    %174 = vector.shape_cast %173 : vector<24xf32> to vector<24x1xf32>
    %cst_54 = arith.constant 3.200000e+01 : f32
    %175 = vector.broadcast %cst_54 : f32 to vector<24x1xf32>
    %176 = arith.divf %174, %175 : vector<24x1xf32>
    %177 = vector.broadcast %176 : vector<24x1xf32> to vector<24x32xf32>
    %178 = arith.subf %168, %177 : vector<24x32xf32>
    %179 = arith.mulf %178, %178 : vector<24x32xf32>
    %cst_55 = arith.constant dense<0.000000e+00> : vector<24xf32>
    %180 = vector.multi_reduction <add>, %179, %cst_55 [1] : vector<24x32xf32> to vector<24xf32>
    %181 = vector.shape_cast %180 : vector<24xf32> to vector<24x1xf32>
    %cst_56 = arith.constant 3.100000e+01 : f32
    %182 = vector.broadcast %cst_56 : f32 to vector<24x1xf32>
    %183 = arith.divf %181, %182 : vector<24x1xf32>
    %184 = math.sqrt %183 : vector<24x1xf32>
    %cst_57 = arith.constant 9.99999997E-7 : f32
    %185 = vector.broadcast %cst_57 : f32 to vector<24x1xf32>
    %186 = arith.addf %184, %185 : vector<24x1xf32>
    %187 = tpu.reciprocal %186 {approx = true} : vector<24x1xf32> -> vector<24x1xf32>
    %188 = vector.broadcast %170 : f32 to vector<24x32xf32>
    %189 = arith.mulf %188, %178 : vector<24x32xf32>
    %190 = vector.broadcast %187 : vector<24x1xf32> to vector<24x32xf32>
    %191 = arith.mulf %189, %190 : vector<24x32xf32>
    %192 = vector.broadcast %172 : f32 to vector<24x32xf32>
    %193 = arith.addf %191, %192 : vector<24x32xf32>
    %194 = arith.truncf %193 : vector<24x32xf32> to vector<24x32xbf16>
    %c0_58 = arith.constant 0 : index
    %c0_59 = arith.constant 0 : index
    %c0_60 = arith.constant 0 : index
    %195 = vector.load %arg7[%c0_58, %c0_59, %c0_60] : memref<1x32x64xbf16, #tpu.memory_space<vmem>>, vector<1x32x64xbf16>
    %196 = vector.shape_cast %195 : vector<1x32x64xbf16> to vector<32x64xbf16>
    %cst_61 = arith.constant dense<0.000000e+00> : vector<24x64xf32>
    %197 = tpu.matmul %194, %196, %cst_61 {dimension_numbers = #tpu.dot_dimension_numbers<[1], [0], [0], [1], [0, 0, 1, 1], [], []>} : vector<24x32xbf16>, vector<32x64xbf16>, vector<24x64xf32> -> vector<24x64xf32>
    %c0_62 = arith.constant 0 : index
    %c0_63 = arith.constant 0 : index
    %c0_64 = arith.constant 0 : index
    %198 = vector.load %arg8[%c0_62, %c0_63, %c0_64] : memref<1x1x64xf32, #tpu.memory_space<vmem>>, vector<1x1x64xf32>
    %199 = vector.shape_cast %198 : vector<1x1x64xf32> to vector<1x64xf32>
    %200 = vector.broadcast %199 : vector<1x64xf32> to vector<24x64xf32>
    %201 = arith.addf %197, %200 : vector<24x64xf32>
    %cst_65 = arith.constant 0.000000e+00 : f32
    %202 = vector.broadcast %cst_65 : f32 to vector<24x64xf32>
    %203 = arith.maximumf %201, %202 : vector<24x64xf32>
    %204 = arith.truncf %203 : vector<24x64xf32> to vector<24x64xbf16>
    %c0_66 = arith.constant 0 : index
    %c0_67 = arith.constant 0 : index
    %c0_68 = arith.constant 0 : index
    %205 = vector.load %arg9[%c0_66, %c0_67, %c0_68] : memref<1x64x32xbf16, #tpu.memory_space<vmem>>, vector<1x64x32xbf16>
    %206 = vector.shape_cast %205 : vector<1x64x32xbf16> to vector<64x32xbf16>
    %cst_69 = arith.constant dense<0.000000e+00> : vector<24x32xf32>
    %207 = tpu.matmul %204, %206, %cst_69 {dimension_numbers = #tpu.dot_dimension_numbers<[1], [0], [0], [1], [0, 0, 1, 1], [], []>} : vector<24x64xbf16>, vector<64x32xbf16>, vector<24x32xf32> -> vector<24x32xf32>
    %c0_70 = arith.constant 0 : index
    %c0_71 = arith.constant 0 : index
    %c0_72 = arith.constant 0 : index
    %208 = vector.load %arg10[%c0_70, %c0_71, %c0_72] : memref<1x1x32xf32, #tpu.memory_space<vmem>>, vector<1x1x32xf32>
    %209 = vector.shape_cast %208 : vector<1x1x32xf32> to vector<1x32xf32>
    %210 = vector.broadcast %209 : vector<1x32xf32> to vector<24x32xf32>
    %211 = arith.addf %207, %210 : vector<24x32xf32>
    %212 = arith.addf %168, %211 : vector<24x32xf32>
    %c0_73 = arith.constant 0 : index
    %c0_74 = arith.constant 0 : index
    %213 = vector.load %arg13[%c0_73, %c0_74] : memref<24x32xf32, #tpu.memory_space<vmem>>, vector<24x32xf32>
    tpu.vector_store %arg13[%c0_73, %c0_74], %212 {strides = array<i32>} : memref<24x32xf32, #tpu.memory_space<vmem>>, vector<24x32xf32>,
    %c1_i32 = arith.constant 1 : i32
    %214 = arith.cmpi eq, %arg1, %c1_i32 : i32
    %215 = arith.extui %214 : i1 to i32
    %c0_i32_75 = arith.constant 0 : i32
    %216 = arith.cmpi ne, %215, %c0_i32_75 : i32
    scf.if %216 {
      %217 = vector.shape_cast %212 : vector<24x32xf32> to vector<1x24x32xf32>
      %218 = vector.extract_strided_slice %217 {offsets = [0, 0, 0], sizes = [1, 8, 32], strides = [1, 1, 1]} : vector<1x24x32xf32> to vector<1x8x32xf32>
      %c0_76 = arith.constant 0 : index
      %c0_77 = arith.constant 0 : index
      %c0_78 = arith.constant 0 : index
      %219 = vector.load %arg12[%c0_76, %c0_77, %c0_78] : memref<1x8x32xf32, #tpu.memory_space<vmem>>, vector<1x8x32xf32>
      tpu.vector_store %arg12[%c0_76, %c0_77, %c0_78], %218 {strides = array<i32>} : memref<1x8x32xf32, #tpu.memory_space<vmem>>, vector<1x8x32xf32>,
    } else {
    }
    return
  }
  func.func @transform_0(%arg0: i32, %arg1: i32) -> (i32, i32, i32) {
    %c0_i32 = arith.constant 0 : i32
    %c0_i32_0 = arith.constant 0 : i32
    %c0_i32_1 = arith.constant 0 : i32
    return %arg0, %c0_i32, %c0_i32_0 : i32, i32, i32
  }
  func.func @transform_1(%arg0: i32, %arg1: i32) -> (i32, i32, i32) {
    %c0_i32 = arith.constant 0 : i32
    %c0_i32_0 = arith.constant 0 : i32
    %c0_i32_1 = arith.constant 0 : i32
    return %arg1, %c0_i32, %c0_i32_0 : i32, i32, i32
  }
  func.func @transform_2(%arg0: i32, %arg1: i32) -> (i32, i32, i32) {
    %c0_i32 = arith.constant 0 : i32
    %c0_i32_0 = arith.constant 0 : i32
    %c0_i32_1 = arith.constant 0 : i32
    return %arg1, %c0_i32, %c0_i32_0 : i32, i32, i32
  }
  func.func @transform_3(%arg0: i32, %arg1: i32) -> (i32, i32, i32) {
    %c0_i32 = arith.constant 0 : i32
    %c0_i32_0 = arith.constant 0 : i32
    %c0_i32_1 = arith.constant 0 : i32
    return %arg1, %c0_i32, %c0_i32_0 : i32, i32, i32
  }
  func.func @transform_4(%arg0: i32, %arg1: i32) -> (i32, i32, i32) {
    %c0_i32 = arith.constant 0 : i32
    %c0_i32_0 = arith.constant 0 : i32
    %c0_i32_1 = arith.constant 0 : i32
    return %arg1, %c0_i32, %c0_i32_0 : i32, i32, i32
  }
  func.func @transform_5(%arg0: i32, %arg1: i32) -> (i32, i32, i32) {
    %c0_i32 = arith.constant 0 : i32
    %c0_i32_0 = arith.constant 0 : i32
    %c0_i32_1 = arith.constant 0 : i32
    return %arg1, %c0_i32, %c0_i32_0 : i32, i32, i32
  }
  func.func @transform_6(%arg0: i32, %arg1: i32) -> (i32, i32, i32) {
    %c0_i32 = arith.constant 0 : i32
    %c0_i32_0 = arith.constant 0 : i32
    %c0_i32_1 = arith.constant 0 : i32
    return %arg1, %c0_i32, %c0_i32_0 : i32, i32, i32
  }
  func.func @transform_7(%arg0: i32, %arg1: i32) -> (i32, i32, i32) {
    %c0_i32 = arith.constant 0 : i32
    %c0_i32_0 = arith.constant 0 : i32
    %c0_i32_1 = arith.constant 0 : i32
    return %arg1, %c0_i32, %c0_i32_0 : i32, i32, i32
  }
  func.func @transform_8(%arg0: i32, %arg1: i32) -> (i32, i32, i32) {
    %c0_i32 = arith.constant 0 : i32
    %c0_i32_0 = arith.constant 0 : i32
    %c0_i32_1 = arith.constant 0 : i32
    return %arg1, %c0_i32, %c0_i32_0 : i32, i32, i32
  }
  func.func @transform_9(%arg0: i32, %arg1: i32) -> (i32, i32, i32) {
    %c0_i32 = arith.constant 0 : i32
    %c0_i32_0 = arith.constant 0 : i32
    %c0_i32_1 = arith.constant 0 : i32
    %c0_i32_2 = arith.constant 0 : i32
    return %c0_i32, %c0_i32_0, %c0_i32_1 : i32, i32, i32
  }
  func.func @transform_10(%arg0: i32, %arg1: i32) -> (i32, i32, i32) {
    %c0_i32 = arith.constant 0 : i32
    %c0_i32_0 = arith.constant 0 : i32
    %c0_i32_1 = arith.constant 0 : i32
    return %arg0, %c0_i32, %c0_i32_0 : i32, i32, i32
  }
}

module attributes {stable_mosaic.version = 11 : i64} {
  func.func @_head_kernel(%arg0: memref<2x32xf32, #tpu.memory_space<vmem>>, %arg1: memref<2x2xf32, #tpu.memory_space<smem>>, %arg2: memref<32x10xbf16, #tpu.memory_space<vmem>>, %arg3: memref<1x10xf32, #tpu.memory_space<vmem>>, %arg4: memref<2x10xf32, #tpu.memory_space<vmem>>) attributes {dimension_semantics = [], scalar_prefetch = 0 : i64, scratch_operands = 0 : i64, tpu.core_type = #tpu.core_type<tc>} {
    %c0 = arith.constant 0 : index
    %c0_0 = arith.constant 0 : index
    %0 = vector.load %arg0[%c0, %c0_0] : memref<2x32xf32, #tpu.memory_space<vmem>>, vector<2x32xf32>
    %c0_1 = arith.constant 0 : index
    %c0_2 = arith.constant 0 : index
    %1 = memref.load %arg1[%c0_1, %c0_2] : memref<2x2xf32, #tpu.memory_space<smem>>
    %c0_3 = arith.constant 0 : index
    %c1 = arith.constant 1 : index
    %2 = memref.load %arg1[%c0_3, %c1] : memref<2x2xf32, #tpu.memory_space<smem>>
    %cst = arith.constant dense<0.000000e+00> : vector<2xf32>
    %3 = vector.multi_reduction <add>, %0, %cst [1] : vector<2x32xf32> to vector<2xf32>
    %4 = vector.shape_cast %3 : vector<2xf32> to vector<2x1xf32>
    %cst_4 = arith.constant 3.200000e+01 : f32
    %5 = vector.broadcast %cst_4 : f32 to vector<2x1xf32>
    %6 = arith.divf %4, %5 : vector<2x1xf32>
    %7 = vector.broadcast %6 : vector<2x1xf32> to vector<2x32xf32>
    %8 = arith.subf %0, %7 : vector<2x32xf32>
    %9 = arith.mulf %8, %8 : vector<2x32xf32>
    %cst_5 = arith.constant dense<0.000000e+00> : vector<2xf32>
    %10 = vector.multi_reduction <add>, %9, %cst_5 [1] : vector<2x32xf32> to vector<2xf32>
    %11 = vector.shape_cast %10 : vector<2xf32> to vector<2x1xf32>
    %cst_6 = arith.constant 3.100000e+01 : f32
    %12 = vector.broadcast %cst_6 : f32 to vector<2x1xf32>
    %13 = arith.divf %11, %12 : vector<2x1xf32>
    %14 = math.sqrt %13 : vector<2x1xf32>
    %cst_7 = arith.constant 9.99999997E-7 : f32
    %15 = vector.broadcast %cst_7 : f32 to vector<2x1xf32>
    %16 = arith.addf %14, %15 : vector<2x1xf32>
    %17 = tpu.reciprocal %16 {approx = true} : vector<2x1xf32> -> vector<2x1xf32>
    %18 = vector.broadcast %1 : f32 to vector<2x32xf32>
    %19 = arith.mulf %18, %8 : vector<2x32xf32>
    %20 = vector.broadcast %17 : vector<2x1xf32> to vector<2x32xf32>
    %21 = arith.mulf %19, %20 : vector<2x32xf32>
    %22 = vector.broadcast %2 : f32 to vector<2x32xf32>
    %23 = arith.addf %21, %22 : vector<2x32xf32>
    %c1_8 = arith.constant 1 : index
    %c0_9 = arith.constant 0 : index
    %24 = memref.load %arg1[%c1_8, %c0_9] : memref<2x2xf32, #tpu.memory_space<smem>>
    %c1_10 = arith.constant 1 : index
    %c1_11 = arith.constant 1 : index
    %25 = memref.load %arg1[%c1_10, %c1_11] : memref<2x2xf32, #tpu.memory_space<smem>>
    %cst_12 = arith.constant dense<0.000000e+00> : vector<2xf32>
    %26 = vector.multi_reduction <add>, %23, %cst_12 [1] : vector<2x32xf32> to vector<2xf32>
    %27 = vector.shape_cast %26 : vector<2xf32> to vector<2x1xf32>
    %cst_13 = arith.constant 3.200000e+01 : f32
    %28 = vector.broadcast %cst_13 : f32 to vector<2x1xf32>
    %29 = arith.divf %27, %28 : vector<2x1xf32>
    %30 = vector.broadcast %29 : vector<2x1xf32> to vector<2x32xf32>
    %31 = arith.subf %23, %30 : vector<2x32xf32>
    %32 = arith.mulf %31, %31 : vector<2x32xf32>
    %cst_14 = arith.constant dense<0.000000e+00> : vector<2xf32>
    %33 = vector.multi_reduction <add>, %32, %cst_14 [1] : vector<2x32xf32> to vector<2xf32>
    %34 = vector.shape_cast %33 : vector<2xf32> to vector<2x1xf32>
    %cst_15 = arith.constant 3.100000e+01 : f32
    %35 = vector.broadcast %cst_15 : f32 to vector<2x1xf32>
    %36 = arith.divf %34, %35 : vector<2x1xf32>
    %37 = math.sqrt %36 : vector<2x1xf32>
    %cst_16 = arith.constant 9.99999997E-7 : f32
    %38 = vector.broadcast %cst_16 : f32 to vector<2x1xf32>
    %39 = arith.addf %37, %38 : vector<2x1xf32>
    %40 = tpu.reciprocal %39 {approx = true} : vector<2x1xf32> -> vector<2x1xf32>
    %41 = vector.broadcast %24 : f32 to vector<2x32xf32>
    %42 = arith.mulf %41, %31 : vector<2x32xf32>
    %43 = vector.broadcast %40 : vector<2x1xf32> to vector<2x32xf32>
    %44 = arith.mulf %42, %43 : vector<2x32xf32>
    %45 = vector.broadcast %25 : f32 to vector<2x32xf32>
    %46 = arith.addf %44, %45 : vector<2x32xf32>
    %47 = arith.truncf %46 : vector<2x32xf32> to vector<2x32xbf16>
    %c0_17 = arith.constant 0 : index
    %c0_18 = arith.constant 0 : index
    %48 = vector.load %arg2[%c0_17, %c0_18] : memref<32x10xbf16, #tpu.memory_space<vmem>>, vector<32x10xbf16>
    %cst_19 = arith.constant dense<0.000000e+00> : vector<2x10xf32>
    %49 = tpu.matmul %47, %48, %cst_19 {dimension_numbers = #tpu.dot_dimension_numbers<[1], [0], [0], [1], [0, 0, 1, 1], [], []>} : vector<2x32xbf16>, vector<32x10xbf16>, vector<2x10xf32> -> vector<2x10xf32>
    %c0_20 = arith.constant 0 : index
    %c0_21 = arith.constant 0 : index
    %50 = vector.load %arg3[%c0_20, %c0_21] : memref<1x10xf32, #tpu.memory_space<vmem>>, vector<1x10xf32>
    %51 = vector.broadcast %50 : vector<1x10xf32> to vector<2x10xf32>
    %52 = arith.addf %49, %51 : vector<2x10xf32>
    %c0_22 = arith.constant 0 : index
    %c0_23 = arith.constant 0 : index
    %53 = vector.load %arg4[%c0_22, %c0_23] : memref<2x10xf32, #tpu.memory_space<vmem>>, vector<2x10xf32>
    tpu.vector_store %arg4[%c0_22, %c0_23], %52 {strides = array<i32>} : memref<2x10xf32, #tpu.memory_space<vmem>>, vector<2x10xf32>,
    return
  }
}

</mosaic_0001>

<llo_original>
// kernel: vit_forward.5
$region0: #{vit_forward.5}
  #allocation0 [shape = 'u32[]', space=smem, size = 0x4, offset = 0x4, fixed_abs, tag = 'smem constant byte address 0x4 - core index']
  #allocation1 [shape = 'u32[144,128]{1,0:T(1,128)}', space=vmem, size = 0x12000, scoped, tag = 'internal scratch']
  %s0 = inlined_call_operand.vmem [shape: f32[2,32], index: 0, kind: input, shape index: {}]
  %s1 = inlined_call_operand.vmem [shape: f32[2,2], index: 1, kind: input, shape index: {}]
  %s2 = inlined_call_operand.vmem [shape: bf16[32,10], index: 2, kind: input, shape index: {}]
  %s3 = inlined_call_operand.vmem [shape: f32[1,10], index: 3, kind: input, shape index: {}]
  %s4 = inlined_call_operand.hbm [shape: f32[2,10], index: 4, kind: output, shape index: {}]
  %s5 = sld [smem:[#allocation0]]
  $region30: #{vit_forward.5} parent=0
    _
  %s7 = ssub.s32 1, %s5
  %s8 = scalar_select 0, %s7, %s5
  $region1: #{vit_forward.5} parent=0
    #allocation2 [shape = 'u8[1024]{0}', space=smem, size = 0x400, scoped, tag = 'input window, operand 1, single buffered']
    #allocation3 [shape = 's32[1]{0}', space=sflag, size = 0x4, scoped, tag = 'scoped memory for vit_forward.5']
    #allocation4 [shape = 's32[1]{0}', space=sflag, size = 0x4, scoped, tag = 'scoped memory for vit_forward.5']
    #allocation5 [shape = 'u8[1024]{0}', space=vmem, size = 0x400, scoped, tag = 'output window, operand 0, single buffered']
    %9 = vsyncpa [#allocation4], 0
    %10 = vsyncpa [#allocation3], 0
    // Predicated region
    $region2: #{vit_forward.5} parent=1 // pred_check
      _
    $region3: #{vit_forward.5} parent=1 // pred_check_branch
      %12 = sbr.rel (0) target = $region5
    $region4: #{vit_forward.5} parent=1 // pred_region
      _
    $region5: #{vit_forward.5} parent=1 // pred_fallthru
      _
    // Predicated region
    $region6: #{vit_forward.5} parent=1 // pred_check
      _
    $region7: #{vit_forward.5} parent=1 // pred_check_branch
      %14 = sbr.rel (0) target = $region9
    $region8: #{vit_forward.5} parent=1 // pred_region
      %s16 = ssub.s32 32, 32
      %17 = vsyncadd [#allocation4], %s16
      %s19 = sshll.u32 %s1, 4
      %s20 = int_to_ptr.vmem [resolvable:$true] %s19
      %22 = dma.vmem_to_smem %s20, 32, [#allocation2], [#allocation4]
    $region9: #{vit_forward.5} parent=1 // pred_fallthru
      _
    // Predicated region
    $region10: #{vit_forward.5} parent=1 // pred_check
      _
    $region11: #{vit_forward.5} parent=1 // pred_check_branch
      %24 = sbr.rel (0) target = $region13
    $region12: #{vit_forward.5} parent=1 // pred_region
      _
    $region13: #{vit_forward.5} parent=1 // pred_fallthru
      _
    // Predicated region
    $region14: #{vit_forward.5} parent=1 // pred_check
      _
    $region15: #{vit_forward.5} parent=1 // pred_check_branch
      %26 = sbr.rel (0) target = $region17
    $region16: #{vit_forward.5} parent=1 // pred_region
      _
    $region17: #{vit_forward.5} parent=1 // pred_fallthru
      _
    // Predicated region
    $region18: #{vit_forward.5} parent=1 // pred_check
      _
    $region19: #{vit_forward.5} parent=1 // pred_check_branch
      %28 = sbr.rel (0) target = $region21
    $region20: #{vit_forward.5} parent=1 // pred_region
      %29 = dma.done [#allocation4], 32
    $region21: #{vit_forward.5} parent=1 // pred_fallthru
      _
    %30 = sfence
    %v32 = vld [vmem:[%s0] sm:$0x3]
    %s33 = sld [smem:[#allocation2]]
    %s34 = sld [smem:[#allocation2 + $0x1]]
    %vm35 = vcmask 254976
    %v36 = vsel %vm35, %v32, 0.0
    %37 = vadd.xlane.f32.xlu0 %v36
    %v38 = vpop.xlane.xlu0 %37
    %v39 = vrcp.pop 32.0
    %v40 = vmul.f32 %v38, %v39
    %v41 = vsub.f32 %v32, %v40
    %v42 = vmul.f32 %v41, %v41
    %v43 = vsel %vm35, %v42, 0.0
    %44 = vadd.xlane.f32.xlu0 %v43
    %v45 = vpop.xlane.xlu0 %44
    %v46 = vrcp.pop 31.0
    %v47 = vmul.f32 %v45, %v46
    %v48 = vrsqrt.pop %v47
    %v49 = vmul.f32 %v47, %v48
    %vm50 = vcmp.eq.f32.partialorder %v47, inf
    %v51 = vsel %vm50, %v47, %v49
    %vm52 = vcmp.eq.f32.partialorder %v47, 0.0
    %v53 = vand.u32 %v47, 2147483648
    %v54 = vsel %vm52, %v53, %v51
    %v55 = vadd.f32 %v54, 1e-06
    %v56 = vrcp.pop %v55
    %v57 = vstv %s33
    %v58 = vmul.f32 %v57, %v41
    %v59 = vmul.f32 %v58, %v56
    %v60 = vstv %s34
    %v61 = vadd.f32 %v59, %v60
    %s62 = sld [smem:[#allocation2 + $0x80]]
    %s63 = sld [smem:[#allocation2 + $0x81]]
    %v64 = vsel %vm35, %v61, 0.0
    %65 = vadd.xlane.f32.xlu0 %v64
    %v66 = vpop.xlane.xlu0 %65
    %v67 = vmul.f32 %v66, %v39
    %v68 = vsub.f32 %v61, %v67
    %v69 = vmul.f32 %v68, %v68
    %v70 = vsel %vm35, %v69, 0.0
    %71 = vadd.xlane.f32.xlu0 %v70
    %v72 = vpop.xlane.xlu0 %71
    %v73 = vmul.f32 %v72, %v46
    %v74 = vrsqrt.pop %v73
    %v75 = vmul.f32 %v73, %v74
    %vm76 = vcmp.eq.f32.partialorder %v73, inf
    %v77 = vsel %vm76, %v73, %v75
    %vm78 = vcmp.eq.f32.partialorder %v73, 0.0
    %v79 = vand.u32 %v73, 2147483648
    %v80 = vsel %vm78, %v79, %v77
    %v81 = vadd.f32 %v80, 1e-06
    %v82 = vrcp.pop %v81
    %v83 = vstv %s62
    %v84 = vmul.f32 %v83, %v68
    %v85 = vmul.f32 %v84, %v82
    %v86 = vstv %s63
    %v87 = vadd.f32 %v85, %v86
    %v88 = vpack.c.bf16 %v87, %v87
    %v89 = vld [vmem:[%s2] sm:$0xf]
    %v90 = vld [vmem:[%s2 + $0x4] sm:$0xf]
    %v91 = vld [vmem:[%s2 + $0x8] sm:$0xf]
    %v92 = vld [vmem:[%s2 + $0xc] sm:$0xf]
    %v93 = vld [vmem:[%s3] sm:$0x1]
    %v95 = vlaneseq
    %v96 = vshrl.u32 %v95, 7
    %v97 = vsub.s32 0, %v96
    %v98 = vrot.slane %v93, %v97
    %v104 = vunpack.c.l.b16 %v89
    %v105 = vunpack.c.l.b16 %v90
    %v106 = vunpack.c.l.b16 %v91
    %v107 = vunpack.c.l.b16 %v92
    %v108 = vpack.c.b16 %v105, %v104
    %v109 = vpack.c.b16 %v107, %v106
    %vm112 = vcmask 261120
    %v114 = vsel %vm112, %v88, 0
    %116 = vmatprep.subr.bf16.mxu0 0
    %117 = vmatpush1.bf16.msra.mxu0 %v108
    %118 = vmatprep.subr.bf16.mxu0 0
    %119 = vmatpush1.bf16.msra.mxu0 %v109
    %120 = vmatprep.subr.bf16.mxu0 0
    %121 = vmatpush1.bf16.msra.mxu0 0
    %122 = vmatprep.subr.bf16.mxu0 0
    %123 = vmatpush1.bf16.msra.mxu0 0
    %124 = vmatprep.subr.bf16.mxu0 0
    %125 = vmatpush1.bf16.msra.mxu0 0
    %126 = vmatprep.subr.bf16.mxu0 0
    %127 = vmatpush1.bf16.msra.mxu0 0
    %128 = vmatprep.subr.bf16.mxu0 0
    %129 = vmatpush1.bf16.msra.mxu0 0
    %130 = vmatprep.subr.bf16.mxu0 0
    %131 = vmatpush1.bf16.msra.mxu0 0
    %132 = vmatprep.subr.bf16.mxu0 0
    %133 = vmatpush1.bf16.msra.mxu0 0
    %134 = vmatprep.subr.bf16.mxu0 0
    %135 = vmatpush1.bf16.msra.mxu0 0
    %136 = vmatprep.subr.bf16.mxu0 0
    %137 = vmatpush1.bf16.msra.mxu0 0
    %138 = vmatprep.subr.bf16.mxu0 0
    %139 = vmatpush1.bf16.msra.mxu0 0
    %140 = vmatprep.subr.bf16.mxu0 0
    %141 = vmatpush1.bf16.msra.mxu0 0
    %142 = vmatprep.subr.bf16.mxu0 0
    %143 = vmatpush1.bf16.msra.mxu0 0
    %144 = vmatprep.subr.bf16.mxu0 0
    %145 = vmatpush1.bf16.msra.mxu0 0
    %146 = vmatprep.subr.bf16.mxu0 0
    %147 = vmatpush1.bf16.msra.mxu0 0
    %148 = vmatprep.mubr.bf16.mxu0 0
    %149 = vmatmul.mubr.bf16.gmra.mrb[0].mxu0 %v114
    %v150 = vpop.f32.mrb[0].mxu0
    %v151 = vadd.f32 %v98, %v150
    %v152 = vpop.f32.mrb[0].mxu0
    %v153 = vpop.f32.mrb[0].mxu0
    %v154 = vpop.f32.mrb[0].mxu0
    %155 = vdwg.mxu0
    %vm156 = vcmask 74752
    %157 = vst.msk [vmem:[#allocation5] sm:$0x3] %vm156, %v151
    // Predicated region
    $region22: #{vit_forward.5} parent=1 // pred_check
      _
    $region23: #{vit_forward.5} parent=1 // pred_check_branch
      %159 = sbr.rel (0) target = $region25
    $region24: #{vit_forward.5} parent=1 // pred_region
      %s161 = ssub.s32 32, 32
      %162 = vsyncadd [#allocation3], %s161
      %s164 = sshll.u32 [#allocation5], 4
      %s165 = int_to_ptr.vmem [resolvable:$true] %s164
      %167 = dma.vmem_to_hbm [thread:$0]  %s165, 32, %s4, [#allocation3]
    $region25: #{vit_forward.5} parent=1 // pred_fallthru
      _
    // Predicated region
    $region26: #{vit_forward.5} parent=1 // pred_check
      _
    $region27: #{vit_forward.5} parent=1 // pred_check_branch
      %169 = sbr.rel (0) target = $region29
    $region28: #{vit_forward.5} parent=1 // pred_region
      %170 = dma.done [#allocation3], 32
    $region29: #{vit_forward.5} parent=1 // pred_fallthru
      _
    %171 = vsyncpa [#allocation3], 1
    %172 = vsyncpa [#allocation4], 1

// kernel: vit_forward.3
$region0: #{vit_forward.3}
  #allocation0 [shape = 'u32[]', space=smem, size = 0x4, offset = 0x4, fixed_abs, tag = 'smem constant byte address 0x4 - core index']
  #allocation1 [shape = 'u32[144,128]{1,0:T(1,128)}', space=vmem, size = 0x12000, scoped, tag = 'internal scratch']
  %s0 = inlined_call_operand.vmem [shape: f32[32,64], index: 0, kind: input, shape index: {}]
  %s1 = inlined_call_operand.vmem [shape: bf16[64,32], index: 1, kind: input, shape index: {}]
  %s2 = inlined_call_operand.vmem [shape: f32[1,32], index: 2, kind: input, shape index: {}]
  %s3 = inlined_call_operand.vmem [shape: f32[32,32], index: 3, kind: output, shape index: {}]
  %s4 = sld [smem:[#allocation0]]
  $region22: #{vit_forward.3} parent=0
    _
  %s6 = ssub.s32 1, %s4
  %s7 = scalar_select 0, %s6, %s4
  // Predicated region
  $region2: #{vit_forward.3} parent=0 // pred_check
    _
  $region3: #{vit_forward.3} parent=0 // pred_check_branch
    %9 = sbr.rel (0) target = $region5
  $region4: #{vit_forward.3} parent=0 // pred_region
    _
  $region5: #{vit_forward.3} parent=0 // pred_fallthru
    _
  // Predicated region
  $region6: #{vit_forward.3} parent=0 // pred_check
    _
  $region7: #{vit_forward.3} parent=0 // pred_check_branch
    %11 = sbr.rel (0) target = $region9
  $region8: #{vit_forward.3} parent=0 // pred_region
    _
  $region9: #{vit_forward.3} parent=0 // pred_fallthru
    _
  // Predicated region
  $region10: #{vit_forward.3} parent=0 // pred_check
    _
  $region11: #{vit_forward.3} parent=0 // pred_check_branch
    %13 = sbr.rel (0) target = $region13
  $region12: #{vit_forward.3} parent=0 // pred_region
    _
  $region13: #{vit_forward.3} parent=0 // pred_fallthru
    _
  %v15 = vld [vmem:[%s0] sm:$0xff]
  %v16 = vld [vmem:[%s0 + $0x8] sm:$0xff]
  %v17 = vld [vmem:[%s0 + $0x10] sm:$0xff]
  %v18 = vld [vmem:[%s0 + $0x18] sm:$0xff]
  %v19 = vpack.c.bf16 %v16, %v15
  %v20 = vpack.c.bf16 %v18, %v17
  %v21 = vld [vmem:[%s1] sm:$0xf]
  %v22 = vld [vmem:[%s1 + $0x4] sm:$0xf]
  %v23 = vld [vmem:[%s1 + $0x8] sm:$0xf]
  %v24 = vld [vmem:[%s1 + $0xc] sm:$0xf]
  %v25 = vld [vmem:[%s1 + $0x10] sm:$0xf]
  %v26 = vld [vmem:[%s1 + $0x14] sm:$0xf]
  %v27 = vld [vmem:[%s1 + $0x18] sm:$0xf]
  %v28 = vld [vmem:[%s1 + $0x1c] sm:$0xf]
  %v29 = vld [vmem:[%s2] sm:$0x1]
  %v31 = vlaneseq
  %v32 = vshrl.u32 %v31, 7
  %v33 = vsub.s32 0, %v32
  %v34 = vrot.slane %v29, %v33
  %v44 = vunpack.c.l.b16 %v21
  %v45 = vunpack.c.l.b16 %v22
  %v46 = vunpack.c.l.b16 %v23
  %v47 = vunpack.c.l.b16 %v24
  %v48 = vunpack.c.l.b16 %v25
  %v49 = vunpack.c.l.b16 %v26
  %v50 = vunpack.c.l.b16 %v27
  %v51 = vunpack.c.l.b16 %v28
  %v52 = vpack.c.b16 %v45, %v44
  %v53 = vpack.c.b16 %v47, %v46
  %v54 = vpack.c.b16 %v49, %v48
  %v55 = vpack.c.b16 %v51, %v50
  %vm60 = vcmask 523264
  %v62 = vsel %vm60, %v19, 0
  %v65 = vsel %vm60, %v20, 0
  %67 = vmatprep.subr.bf16.mxu0 0
  %68 = vmatpush1.bf16.msra.mxu0 %v52
  %69 = vmatprep.subr.bf16.mxu0 0
  %70 = vmatpush1.bf16.msra.mxu0 %v53
  %71 = vmatprep.subr.bf16.mxu0 0
  %72 = vmatpush1.bf16.msra.mxu0 %v54
  %73 = vmatprep.subr.bf16.mxu0 0
  %74 = vmatpush1.bf16.msra.mxu0 %v55
  %75 = vmatprep.subr.bf16.mxu0 0
  %76 = vmatpush1.bf16.msra.mxu0 0
  %77 = vmatprep.subr.bf16.mxu0 0
  %78 = vmatpush1.bf16.msra.mxu0 0
  %79 = vmatprep.subr.bf16.mxu0 0
  %80 = vmatpush1.bf16.msra.mxu0 0
  %81 = vmatprep.subr.bf16.mxu0 0
  %82 = vmatpush1.bf16.msra.mxu0 0
  %83 = vmatprep.subr.bf16.mxu0 0
  %84 = vmatpush1.bf16.msra.mxu0 0
  %85 = vmatprep.subr.bf16.mxu0 0
  %86 = vmatpush1.bf16.msra.mxu0 0
  %87 = vmatprep.subr.bf16.mxu0 0
  %88 = vmatpush1.bf16.msra.mxu0 0
  %89 = vmatprep.subr.bf16.mxu0 0
  %90 = vmatpush1.bf16.msra.mxu0 0
  %91 = vmatprep.subr.bf16.mxu0 0
  %92 = vmatpush1.bf16.msra.mxu0 0
  %93 = vmatprep.subr.bf16.mxu0 0
  %94 = vmatpush1.bf16.msra.mxu0 0
  %95 = vmatprep.subr.bf16.mxu0 0
  %96 = vmatpush1.bf16.msra.mxu0 0
  %97 = vmatprep.subr.bf16.mxu0 0
  %98 = vmatpush1.bf16.msra.mxu0 0
  %99 = vmatprep.mubr.bf16.mxu0 0
  %100 = vmatmul.mubr.bf16.gmra.mrb[0].mxu0 %v62
  %v101 = vpop.f32.mrb[0].mxu0
  %v102 = vadd.f32 %v34, %v101
  %v103 = vpop.f32.mrb[0].mxu0
  %v104 = vpop.f32.mrb[0].mxu0
  %v105 = vadd.f32 %v34, %v104
  %v106 = vpop.f32.mrb[0].mxu0
  %107 = vmatprep.mubr.bf16.mxu0 0
  %108 = vmatmul.mubr.bf16.gmra.mrb[0].mxu0 %v65
  %v109 = vpop.f32.mrb[0].mxu0
  %v110 = vadd.f32 %v34, %v109
  %v111 = vpop.f32.mrb[0].mxu0
  %v112 = vpop.f32.mrb[0].mxu0
  %v113 = vadd.f32 %v34, %v112
  %v114 = vpop.f32.mrb[0].mxu0
  %115 = vdwg.mxu0
  %vm116 = vcmask 261120
  %117 = vst.msk [vmem:[%s3] sm:$0xff] %vm116, %v102
  %118 = vst.msk [vmem:[%s3 + $0x8] sm:$0xff] %vm116, %v105
  %119 = vst.msk [vmem:[%s3 + $0x10] sm:$0xff] %vm116, %v110
  %120 = vst.msk [vmem:[%s3 + $0x18] sm:$0xff] %vm116, %v113
  // Predicated region
  $region14: #{vit_forward.3} parent=0 // pred_check
    _
  $region15: #{vit_forward.3} parent=0 // pred_check_branch
    %122 = sbr.rel (0) target = $region17
  $region16: #{vit_forward.3} parent=0 // pred_region
    _
  $region17: #{vit_forward.3} parent=0 // pred_fallthru
    _
  // Predicated region
  $region18: #{vit_forward.3} parent=0 // pred_check
    _
  $region19: #{vit_forward.3} parent=0 // pred_check_branch
    %124 = sbr.rel (0) target = $region21
  $region20: #{vit_forward.3} parent=0 // pred_region
    _
  $region21: #{vit_forward.3} parent=0 // pred_fallthru
    _

// kernel: vit_forward.4
$region0: #{vit_forward.4}
  #allocation0 [shape = 'u32[]', space=smem, size = 0x4, offset = 0x4, fixed_abs, tag = 'smem constant byte address 0x4 - core index']
  #allocation1 [shape = 'u32[144,128]{1,0:T(1,128)}', space=vmem, size = 0x12000, scoped, tag = 'internal scratch']
  #allocation2 [shape = 'f32[24,32]{1,0:T(8,128)}', space=vmem, size = 0x3000, scoped, tag = 'scratch operand']
  %s0 = inlined_call_operand.vmem [shape: f32[2,24,32], index: 0, kind: input, shape index: {}]
  %s1 = inlined_call_operand.vmem [shape: bf16[2,32,96], index: 1, kind: input, shape index: {}]
  %s2 = inlined_call_operand.vmem [shape: f32[2,1,96], index: 2, kind: input, shape index: {}]
  %s3 = inlined_call_operand.vmem [shape: bf16[2,32,32], index: 3, kind: input, shape index: {}]
  %s4 = inlined_call_operand.vmem [shape: f32[2,1,32], index: 4, kind: input, shape index: {}]
  %s5 = inlined_call_operand.vmem [shape: bf16[2,32,64], index: 5, kind: input, shape index: {}]
  %s6 = inlined_call_operand.vmem [shape: f32[2,1,64], index: 6, kind: input, shape index: {}]
  %s7 = inlined_call_operand.vmem [shape: bf16[2,64,32], index: 7, kind: input, shape index: {}]
  %s8 = inlined_call_operand.vmem [shape: f32[2,1,32], index: 8, kind: input, shape index: {}]
  %s9 = inlined_call_operand.vmem [shape: f32[2,2,2], index: 9, kind: input, shape index: {}]
  %s10 = inlined_call_operand.vmem [shape: f32[2,8,32], index: 10, kind: output, shape index: {}]
  %s11 = sld [smem:[#allocation0]]
  $region85: #{vit_forward.4} parent=0
    _
  %s13 = ssub.s32 1, %s11
  %s14 = scalar_select 0, %s13, %s11
  $region1: #{vit_forward.4} parent=0
    #allocation3 [shape = 'u8[2048]{0}', space=smem, size = 0x800, scoped, tag = 'input window, operand 9, single buffered']
    #allocation4 [shape = 's32[2]{0}', space=sflag, size = 0x8, scoped, tag = 'scoped memory for vit_forward.4']
    %15 = vsyncpa [#allocation4], 0
    loop: start=0, step=1, limit=6
    $region2: #{vit_forward.4} parent=1 // loop_pre_header
      _
    $region3: #{vit_forward.4} parent=1 // loop_header
      %s17 = sphi 0, %s21
      %p18 = scmp.ge.s32.totalorder %s17, 6
      %s24 = sphi 0, %s36
      %s25 = sphi 0, %s32
      %s26 = sphi 0, %s24
      %s27 = sphi 0, %s25
      %s28 = sphi 0, %s26
      %s29 = sphi 0, %s27
      %s39 = sphi 0, %s41
      %s42 = sphi 0, %s39
      %s43 = sphi 0, %s42
      %s59 = sphi 0, %s43
      %s65 = sphi 0, %s67
      %s68 = sphi 0, %s65
      %s69 = sphi 0, %s68
      %s85 = sphi 0, %s69
      %s91 = sphi 0, %s93
      %s94 = sphi 0, %s91
      %s95 = sphi 0, %s94
      %s111 = sphi 0, %s95
      %s117 = sphi 0, %s119
      %s120 = sphi 0, %s117
      %s121 = sphi 0, %s120
      %s137 = sphi 0, %s121
      %s143 = sphi 0, %s145
      %s146 = sphi 0, %s143
      %s147 = sphi 0, %s146
      %s163 = sphi 0, %s147
      %s169 = sphi 0, %s171
      %s172 = sphi 0, %s169
      %s173 = sphi 0, %s172
      %s189 = sphi 0, %s173
      %s195 = sphi 0, %s197
      %s198 = sphi 0, %s195
      %s199 = sphi 0, %s198
      %s215 = sphi 0, %s199
      %s221 = sphi 0, %s223
      %s224 = sphi 0, %s221
      %s225 = sphi 0, %s224
      %s241 = sphi 0, %s225
      %s247 = sphi 0, %s249
      %s250 = sphi 0, %s247
      %s251 = sphi 0, %s250
      %s267 = sphi 0, %s251
      %s271 = sphi 0, %s271
      %s273 = sphi 0, %s271
      %s274 = sphi 0, %s273
      %s288 = sphi 0, %s274
      %s294 = sphi 0, %s296
      %s297 = sphi 0, %s294
      %s298 = sphi 0, %s297
      %s314 = sphi 0, %s298
    $region4: #{vit_forward.4} parent=1 // loop_header_branch
      %20 = sbr.rel (%p18) target = $region8
    $region5: #{vit_forward.4} parent=1 // loop_body
      %s22 = ssub.s32 %s17, 1
      %s23 = ssub.s32 %s17, 2
      %s30 = sadd.s32 1, %s25
      %p31 = scmp.ge.s32.totalorder %s30, 2
      %s32 = scalar_select %p31, 0, %s30
      %s33 = sadd.s32 1, %s24
      %s34 = scalar_select %p31, %s33, %s24
      %p35 = scmp.ge.s32.totalorder %s34, 2
      %s36 = scalar_select %p35, 0, %s34
      %s37 = ssub.s32 %s24, %s36
      %p38 = scmp.eq.s32.totalorder %s37, 0
      %s40 = sadd.s32 %s39, 1
      %s41 = scalar_select %p38, %s39, %s40
      %p44 = pneg %p38
      %p45 = scmp.eq.s32.totalorder %s17, 3
      %p46 = por %p44, %p45
      %p47 = scmp.ne.s32.totalorder %s39, %s42
      %p48 = scmp.eq.s32.totalorder %s17, 0
      %p49 = por %p47, %p48
      %p50 = scmp.ne.s32.totalorder %s39, %s42
      %p51 = scmp.eq.s32.totalorder %s22, 3
      %p52 = por %p50, %p51
      %p53 = scmp.ne.s32.totalorder %s42, %s43
      %p54 = scmp.eq.s32.totalorder %s22, 0
      %p55 = por %p53, %p54
      %p56 = scmp.ne.s32.totalorder %s42, %s43
      %p57 = scmp.eq.s32.totalorder %s23, 3
      %p58 = por %p56, %p57
      %p60 = scmp.ne.s32.totalorder %s43, %s59
      %p61 = scmp.eq.s32.totalorder %s23, 0
      %p62 = por %p60, %p61
      %s63 = ssub.s32 %s25, %s32
      %p64 = scmp.eq.s32.totalorder %s63, 0
      %s66 = sadd.s32 %s65, 1
      %s67 = scalar_select %p64, %s65, %s66
      %p70 = pneg %p64
      %p71 = scmp.eq.s32.totalorder %s17, 3
      %p72 = por %p70, %p71
      %p73 = scmp.ne.s32.totalorder %s65, %s68
      %p74 = scmp.eq.s32.totalorder %s17, 0
      %p75 = por %p73, %p74
      %p76 = scmp.ne.s32.totalorder %s65, %s68
      %p77 = scmp.eq.s32.totalorder %s22, 3
      %p78 = por %p76, %p77
      %p79 = scmp.ne.s32.totalorder %s68, %s69
      %p80 = scmp.eq.s32.totalorder %s22, 0
      %p81 = por %p79, %p80
      %p82 = scmp.ne.s32.totalorder %s68, %s69
      %p83 = scmp.eq.s32.totalorder %s23, 3
      %p84 = por %p82, %p83
      %p86 = scmp.ne.s32.totalorder %s69, %s85
      %p87 = scmp.eq.s32.totalorder %s23, 0
      %p88 = por %p86, %p87
      %s89 = ssub.s32 %s25, %s32
      %p90 = scmp.eq.s32.totalorder %s89, 0
      %s92 = sadd.s32 %s91, 1
      %s93 = scalar_select %p90, %s91, %s92
      %p96 = pneg %p90
      %p97 = scmp.eq.s32.totalorder %s17, 3
      %p98 = por %p96, %p97
      %p99 = scmp.ne.s32.totalorder %s91, %s94
      %p100 = scmp.eq.s32.totalorder %s17, 0
      %p101 = por %p99, %p100
      %p102 = scmp.ne.s32.totalorder %s91, %s94
      %p103 = scmp.eq.s32.totalorder %s22, 3
      %p104 = por %p102, %p103
      %p105 = scmp.ne.s32.totalorder %s94, %s95
      %p106 = scmp.eq.s32.totalorder %s22, 0
      %p107 = por %p105, %p106
      %p108 = scmp.ne.s32.totalorder %s94, %s95
      %p109 = scmp.eq.s32.totalorder %s23, 3
      %p110 = por %p108, %p109
      %p112 = scmp.ne.s32.totalorder %s95, %s111
      %p113 = scmp.eq.s32.totalorder %s23, 0
      %p114 = por %p112, %p113
      %s115 = ssub.s32 %s25, %s32
      %p116 = scmp.eq.s32.totalorder %s115, 0
      %s118 = sadd.s32 %s117, 1
      %s119 = scalar_select %p116, %s117, %s118
      %p122 = pneg %p116
      %p123 = scmp.eq.s32.totalorder %s17, 3
      %p124 = por %p122, %p123
      %p125 = scmp.ne.s32.totalorder %s117, %s120
      %p126 = scmp.eq.s32.totalorder %s17, 0
      %p127 = por %p125, %p126
      %p128 = scmp.ne.s32.totalorder %s117, %s120
      %p129 = scmp.eq.s32.totalorder %s22, 3
      %p130 = por %p128, %p129
      %p131 = scmp.ne.s32.totalorder %s120, %s121
      %p132 = scmp.eq.s32.totalorder %s22, 0
      %p133 = por %p131, %p132
      %p134 = scmp.ne.s32.totalorder %s120, %s121
      %p135 = scmp.eq.s32.totalorder %s23, 3
      %p136 = por %p134, %p135
      %p138 = scmp.ne.s32.totalorder %s121, %s137
      %p139 = scmp.eq.s32.totalorder %s23, 0
      %p140 = por %p138, %p139
      %s141 = ssub.s32 %s25, %s32
      %p142 = scmp.eq.s32.totalorder %s141, 0
      %s144 = sadd.s32 %s143, 1
      %s145 = scalar_select %p142, %s143, %s144
      %p148 = pneg %p142
      %p149 = scmp.eq.s32.totalorder %s17, 3
      %p150 = por %p148, %p149
      %p151 = scmp.ne.s32.totalorder %s143, %s146
      %p152 = scmp.eq.s32.totalorder %s17, 0
      %p153 = por %p151, %p152
      %p154 = scmp.ne.s32.totalorder %s143, %s146
      %p155 = scmp.eq.s32.totalorder %s22, 3
      %p156 = por %p154, %p155
      %p157 = scmp.ne.s32.totalorder %s146, %s147
      %p158 = scmp.eq.s32.totalorder %s22, 0
      %p159 = por %p157, %p158
      %p160 = scmp.ne.s32.totalorder %s146, %s147
      %p161 = scmp.eq.s32.totalorder %s23, 3
      %p162 = por %p160, %p161
      %p164 = scmp.ne.s32.totalorder %s147, %s163
      %p165 = scmp.eq.s32.totalorder %s23, 0
      %p166 = por %p164, %p165
      %s167 = ssub.s32 %s25, %s32
      %p168 = scmp.eq.s32.totalorder %s167, 0
      %s170 = sadd.s32 %s169, 1
      %s171 = scalar_select %p168, %s169, %s170
      %p174 = pneg %p168
      %p175 = scmp.eq.s32.totalorder %s17, 3
      %p176 = por %p174, %p175
      %p177 = scmp.ne.s32.totalorder %s169, %s172
      %p178 = scmp.eq.s32.totalorder %s17, 0
      %p179 = por %p177, %p178
      %p180 = scmp.ne.s32.totalorder %s169, %s172
      %p181 = scmp.eq.s32.totalorder %s22, 3
      %p182 = por %p180, %p181
      %p183 = scmp.ne.s32.totalorder %s172, %s173
      %p184 = scmp.eq.s32.totalorder %s22, 0
      %p185 = por %p183, %p184
      %p186 = scmp.ne.s32.totalorder %s172, %s173
      %p187 = scmp.eq.s32.totalorder %s23, 3
      %p188 = por %p186, %p187
      %p190 = scmp.ne.s32.totalorder %s173, %s189
      %p191 = scmp.eq.s32.totalorder %s23, 0
      %p192 = por %p190, %p191
      %s193 = ssub.s32 %s25, %s32
      %p194 = scmp.eq.s32.totalorder %s193, 0
      %s196 = sadd.s32 %s195, 1
      %s197 = scalar_select %p194, %s195, %s196
      %p200 = pneg %p194
      %p201 = scmp.eq.s32.totalorder %s17, 3
      %p202 = por %p200, %p201
      %p203 = scmp.ne.s32.totalorder %s195, %s198
      %p204 = scmp.eq.s32.totalorder %s17, 0
      %p205 = por %p203, %p204
      %p206 = scmp.ne.s32.totalorder %s195, %s198
      %p207 = scmp.eq.s32.totalorder %s22, 3
      %p208 = por %p206, %p207
      %p209 = scmp.ne.s32.totalorder %s198, %s199
      %p210 = scmp.eq.s32.totalorder %s22, 0
      %p211 = por %p209, %p210
      %p212 = scmp.ne.s32.totalorder %s198, %s199
      %p213 = scmp.eq.s32.totalorder %s23, 3
      %p214 = por %p212, %p213
      %p216 = scmp.ne.s32.totalorder %s199, %s215
      %p217 = scmp.eq.s32.totalorder %s23, 0
      %p218 = por %p216, %p217
      %s219 = ssub.s32 %s25, %s32
      %p220 = scmp.eq.s32.totalorder %s219, 0
      %s222 = sadd.s32 %s221, 1
      %s223 = scalar_select %p220, %s221, %s222
      %p226 = pneg %p220
      %p227 = scmp.eq.s32.totalorder %s17, 3
      %p228 = por %p226, %p227
      %p229 = scmp.ne.s32.totalorder %s221, %s224
      %p230 = scmp.eq.s32.totalorder %s17, 0
      %p231 = por %p229, %p230
      %p232 = scmp.ne.s32.totalorder %s221, %s224
      %p233 = scmp.eq.s32.totalorder %s22, 3
      %p234 = por %p232, %p233
      %p235 = scmp.ne.s32.totalorder %s224, %s225
      %p236 = scmp.eq.s32.totalorder %s22, 0
      %p237 = por %p235, %p236
      %p238 = scmp.ne.s32.totalorder %s224, %s225
      %p239 = scmp.eq.s32.totalorder %s23, 3
      %p240 = por %p238, %p239
      %p242 = scmp.ne.s32.totalorder %s225, %s241
      %p243 = scmp.eq.s32.totalorder %s23, 0
      %p244 = por %p242, %p243
      %s245 = ssub.s32 %s25, %s32
      %p246 = scmp.eq.s32.totalorder %s245, 0
      %s248 = sadd.s32 %s247, 1
      %s249 = scalar_select %p246, %s247, %s248
      %p252 = pneg %p246
      %p253 = scmp.eq.s32.totalorder %s17, 3
      %p254 = por %p252, %p253
      %p255 = scmp.ne.s32.totalorder %s247, %s250
      %p256 = scmp.eq.s32.totalorder %s17, 0
      %p257 = por %p255, %p256
      %p258 = scmp.ne.s32.totalorder %s247, %s250
      %p259 = scmp.eq.s32.totalorder %s22, 3
      %p260 = por %p258, %p259
      %p261 = scmp.ne.s32.totalorder %s250, %s251
      %p262 = scmp.eq.s32.totalorder %s22, 0
      %p263 = por %p261, %p262
      %p264 = scmp.ne.s32.totalorder %s250, %s251
      %p265 = scmp.eq.s32.totalorder %s23, 3
      %p266 = por %p264, %p265
      %p268 = scmp.ne.s32.totalorder %s251, %s267
      %p269 = scmp.eq.s32.totalorder %s23, 0
      %p270 = por %p268, %p269
      %s272 = sadd.s32 %s271, 1
      %p275 = scmp.eq.s32.totalorder %s17, 3
      %p276 = scmp.ne.s32.totalorder %s271, %s273
      %p277 = scmp.eq.s32.totalorder %s17, 0
      %p278 = por %p276, %p277
      %p279 = scmp.ne.s32.totalorder %s271, %s273
      %p280 = scmp.eq.s32.totalorder %s22, 3
      %p281 = por %p279, %p280
      %p282 = scmp.ne.s32.totalorder %s273, %s274
      %p283 = scmp.eq.s32.totalorder %s22, 0
      %p284 = por %p282, %p283
      %p285 = scmp.ne.s32.totalorder %s273, %s274
      %p286 = scmp.eq.s32.totalorder %s23, 3
      %p287 = por %p285, %p286
      %p289 = scmp.ne.s32.totalorder %s274, %s288
      %p290 = scmp.eq.s32.totalorder %s23, 0
      %p291 = por %p289, %p290
      %s292 = ssub.s32 %s24, %s36
      %p293 = scmp.eq.s32.totalorder %s292, 0
      %s295 = sadd.s32 %s294, 1
      %s296 = scalar_select %p293, %s294, %s295
      %p299 = pneg %p293
      %p300 = scmp.eq.s32.totalorder %s17, 3
      %p301 = por %p299, %p300
      %p302 = scmp.ne.s32.totalorder %s294, %s297
      %p303 = scmp.eq.s32.totalorder %s17, 0
      %p304 = por %p302, %p303
      %p305 = scmp.ne.s32.totalorder %s294, %s297
      %p306 = scmp.eq.s32.totalorder %s22, 3
      %p307 = por %p305, %p306
      %p308 = scmp.ne.s32.totalorder %s297, %s298
      %p309 = scmp.eq.s32.totalorder %s22, 0
      %p310 = por %p308, %p309
      %p311 = scmp.ne.s32.totalorder %s297, %s298
      %p312 = scmp.eq.s32.totalorder %s23, 3
      %p313 = por %p311, %p312
      %p315 = scmp.ne.s32.totalorder %s298, %s314
      %p316 = scmp.eq.s32.totalorder %s23, 0
      %p317 = por %p315, %p316
      %p318 = scmp.le.s32.totalorder 1, %s17
      %p319 = scmp.lt.s32.totalorder %s17, 5
      %p320 = pnand %p318, %p319
      %p321 = pneg %p320
      // Predicated region
      $region9: #{vit_forward.4} parent=5 // pred_check
        _
      $region10: #{vit_forward.4} parent=5 // pred_check_branch
        %323 = sbr.rel (%p320) target = $region12
      $region11: #{vit_forward.4} parent=5 // pred_region
        %s324 = ssub.s32 %s17, 1
        // Predicated region
        $region13: #{vit_forward.4} parent=11 // pred_check
          %p325 = pneg %p284
        $region14: #{vit_forward.4} parent=11 // pred_check_branch
          %327 = sbr.rel (%p325) target = $region16
        $region15: #{vit_forward.4} parent=11 // pred_region
          %s329 = ssub.s32 64, 64
          %330 = vsyncadd [#allocation4], %s329
          %s331 = sshll.u32 %s9, 4
          %s332 = int_to_ptr.vmem [resolvable:$true] %s331
          %337 = dma.vmem_to_smem %s332, 64, [#allocation3], [#allocation4], 32, 32, 2
        $region16: #{vit_forward.4} parent=11 // pred_fallthru
          _
      $region12: #{vit_forward.4} parent=5 // pred_fallthru
        _
      %p338 = scmp.lt.s32.totalorder %s17, 4
      // Predicated region
      $region17: #{vit_forward.4} parent=5 // pred_check
        %p339 = pneg %p338
      $region18: #{vit_forward.4} parent=5 // pred_check_branch
        %341 = sbr.rel (%p339) target = $region20
      $region19: #{vit_forward.4} parent=5 // pred_region
        // Predicated region
        $region21: #{vit_forward.4} parent=19 // pred_check
          %p342 = pneg %p49
        $region22: #{vit_forward.4} parent=19 // pred_check_branch
          %344 = sbr.rel (%p342) target = $region24
        $region23: #{vit_forward.4} parent=19 // pred_region
          %p345 = scmp.lt.s32.totalorder %s24, 1
          %s346 = scalar_select %p345, %s24, 1
          %s347 = smul.addr %s346, 3
          %s348 = smul.addr %s347, 8
          %s349 = scalar_lea.vmem %s0, %s348
        $region24: #{vit_forward.4} parent=19 // pred_fallthru
          _
        // Predicated region
        $region25: #{vit_forward.4} parent=19 // pred_check
          %p350 = pneg %p75
        $region26: #{vit_forward.4} parent=19 // pred_check_branch
          %352 = sbr.rel (%p350) target = $region28
        $region27: #{vit_forward.4} parent=19 // pred_region
          %p353 = scmp.lt.s32.totalorder %s25, 1
          %s354 = scalar_select %p353, %s25, 1
          %s355 = smul.addr %s354, 4
          %s356 = smul.addr %s355, 4
          %s357 = scalar_lea.vmem %s1, %s356
        $region28: #{vit_forward.4} parent=19 // pred_fallthru
          _
        // Predicated region
        $region29: #{vit_forward.4} parent=19 // pred_check
          %p358 = pneg %p101
        $region30: #{vit_forward.4} parent=19 // pred_check_branch
          %360 = sbr.rel (%p358) target = $region32
        $region31: #{vit_forward.4} parent=19 // pred_region
          %p361 = scmp.lt.s32.totalorder %s25, 1
          %s362 = scalar_select %p361, %s25, 1
          %s363 = scalar_lea.vmem %s2, %s362
        $region32: #{vit_forward.4} parent=19 // pred_fallthru
          _
        // Predicated region
        $region33: #{vit_forward.4} parent=19 // pred_check
          %p364 = pneg %p127
        $region34: #{vit_forward.4} parent=19 // pred_check_branch
          %366 = sbr.rel (%p364) target = $region36
        $region35: #{vit_forward.4} parent=19 // pred_region
          %p367 = scmp.lt.s32.totalorder %s25, 1
          %s368 = scalar_select %p367, %s25, 1
          %s369 = smul.addr %s368, 4
          %s370 = smul.addr %s369, 4
          %s371 = scalar_lea.vmem %s3, %s370
        $region36: #{vit_forward.4} parent=19 // pred_fallthru
          _
        // Predicated region
        $region37: #{vit_forward.4} parent=19 // pred_check
          %p372 = pneg %p153
        $region38: #{vit_forward.4} parent=19 // pred_check_branch
          %374 = sbr.rel (%p372) target = $region40
        $region39: #{vit_forward.4} parent=19 // pred_region
          %p375 = scmp.lt.s32.totalorder %s25, 1
          %s376 = scalar_select %p375, %s25, 1
          %s377 = scalar_lea.vmem %s4, %s376
        $region40: #{vit_forward.4} parent=19 // pred_fallthru
          _
        // Predicated region
        $region41: #{vit_forward.4} parent=19 // pred_check
          %p378 = pneg %p179
        $region42: #{vit_forward.4} parent=19 // pred_check_branch
          %380 = sbr.rel (%p378) target = $region44
        $region43: #{vit_forward.4} parent=19 // pred_region
          %p381 = scmp.lt.s32.totalorder %s25, 1
          %s382 = scalar_select %p381, %s25, 1
          %s383 = smul.addr %s382, 4
          %s384 = smul.addr %s383, 4
          %s385 = scalar_lea.vmem %s5, %s384
        $region44: #{vit_forward.4} parent=19 // pred_fallthru
          _
        // Predicated region
        $region45: #{vit_forward.4} parent=19 // pred_check
          %p386 = pneg %p205
        $region46: #{vit_forward.4} parent=19 // pred_check_branch
          %388 = sbr.rel (%p386) target = $region48
        $region47: #{vit_forward.4} parent=19 // pred_region
          %p389 = scmp.lt.s32.totalorder %s25, 1
          %s390 = scalar_select %p389, %s25, 1
          %s391 = scalar_lea.vmem %s6, %s390
        $region48: #{vit_forward.4} parent=19 // pred_fallthru
          _
        // Predicated region
        $region49: #{vit_forward.4} parent=19 // pred_check
          %p392 = pneg %p231
        $region50: #{vit_forward.4} parent=19 // pred_check_branch
          %394 = sbr.rel (%p392) target = $region52
        $region51: #{vit_forward.4} parent=19 // pred_region
          %p395 = scmp.lt.s32.totalorder %s25, 1
          %s396 = scalar_select %p395, %s25, 1
          %s397 = smul.addr %s396, 8
          %s398 = smul.addr %s397, 4
          %s399 = scalar_lea.vmem %s7, %s398
        $region52: #{vit_forward.4} parent=19 // pred_fallthru
          _
        // Predicated region
        $region53: #{vit_forward.4} parent=19 // pred_check
          %p400 = pneg %p257
        $region54: #{vit_forward.4} parent=19 // pred_check_branch
          %402 = sbr.rel (%p400) target = $region56
        $region55: #{vit_forward.4} parent=19 // pred_region
          %p403 = scmp.lt.s32.totalorder %s25, 1
          %s404 = scalar_select %p403, %s25, 1
          %s405 = scalar_lea.vmem %s8, %s404
        $region56: #{vit_forward.4} parent=19 // pred_fallthru
          _
      $region20: #{vit_forward.4} parent=5 // pred_fallthru
        _
      %p406 = scmp.le.s32.totalorder 1, %s17
      %p407 = scmp.lt.s32.totalorder %s17, 5
      %p408 = pnand %p406, %p407
      %p409 = pneg %p408
      // Predicated region
      $region57: #{vit_forward.4} parent=5 // pred_check
        _
      $region58: #{vit_forward.4} parent=5 // pred_check_branch
        %411 = sbr.rel (%p408) target = $region60
      $region59: #{vit_forward.4} parent=5 // pred_region
        %s412 = ssub.s32 %s17, 1
        // Predicated region
        $region61: #{vit_forward.4} parent=59 // pred_check
          %p413 = pneg %p284
        $region62: #{vit_forward.4} parent=59 // pred_check_branch
          %415 = sbr.rel (%p413) target = $region64
        $region63: #{vit_forward.4} parent=59 // pred_region
          %416 = dma.done [#allocation4], 64
        $region64: #{vit_forward.4} parent=59 // pred_fallthru
          _
        %417 = sfence
        %p418 = scmp.lt.s32.totalorder %s26, 1
        %s419 = scalar_select %p418, %s26, 1
        %s420 = smul.addr %s419, 3
        %s421 = smul.addr %s420, 8
        %s422 = scalar_lea.vmem %s0, %s421
        %p423 = pneg %p55
        %p424 = pneg %p52
        %p425 = scmp.lt.s32.totalorder %s27, 1
        %s426 = scalar_select %p425, %s27, 1
        %s427 = smul.addr %s426, 4
        %s428 = smul.addr %s427, 4
        %s429 = scalar_lea.vmem %s1, %s428
        %p430 = pneg %p81
        %p431 = pneg %p78
        %p432 = scmp.lt.s32.totalorder %s27, 1
        %s433 = scalar_select %p432, %s27, 1
        %s434 = scalar_lea.vmem %s2, %s433
        %p435 = pneg %p107
        %p436 = pneg %p104
        %p437 = scmp.lt.s32.totalorder %s27, 1
        %s438 = scalar_select %p437, %s27, 1
        %s439 = smul.addr %s438, 4
        %s440 = smul.addr %s439, 4
        %s441 = scalar_lea.vmem %s3, %s440
        %p442 = pneg %p133
        %p443 = pneg %p130
        %p444 = scmp.lt.s32.totalorder %s27, 1
        %s445 = scalar_select %p444, %s27, 1
        %s446 = scalar_lea.vmem %s4, %s445
        %p447 = pneg %p159
        %p448 = pneg %p156
        %p449 = scmp.lt.s32.totalorder %s27, 1
        %s450 = scalar_select %p449, %s27, 1
        %s451 = smul.addr %s450, 4
        %s452 = smul.addr %s451, 4
        %s453 = scalar_lea.vmem %s5, %s452
        %p454 = pneg %p185
        %p455 = pneg %p182
        %p456 = scmp.lt.s32.totalorder %s27, 1
        %s457 = scalar_select %p456, %s27, 1
        %s458 = scalar_lea.vmem %s6, %s457
        %p459 = pneg %p211
        %p460 = pneg %p208
        %p461 = scmp.lt.s32.totalorder %s27, 1
        %s462 = scalar_select %p461, %s27, 1
        %s463 = smul.addr %s462, 8
        %s464 = smul.addr %s463, 4
        %s465 = scalar_lea.vmem %s7, %s464
        %p466 = pneg %p237
        %p467 = pneg %p234
        %p468 = scmp.lt.s32.totalorder %s27, 1
        %s469 = scalar_select %p468, %s27, 1
        %s470 = scalar_lea.vmem %s8, %s469
        %p471 = pneg %p263
        %p472 = pneg %p260
        %p473 = pneg %p284
        %p474 = pneg %p281
        %p475 = pneg %p310
        %p476 = pneg %p307
        %p477 = scmp.lt.s32.totalorder %s26, 1
        %s478 = scalar_select %p477, %s26, 1
        %s479 = smul.addr %s478, 8
        %s480 = scalar_lea.vmem %s10, %s479
        %p481 = scmp.lt.s32.totalorder %s26, 1
        %s482 = scalar_select %p481, %s26, 1
        %s483 = smul.addr %s482, 3
        %s484 = smul.addr %s483, 8
        %s485 = scalar_lea.vmem %s0, %s484
        %p486 = scmp.lt.s32.totalorder %s27, 1
        %s487 = scalar_select %p486, %s27, 1
        %s488 = smul.addr %s487, 4
        %s489 = smul.addr %s488, 4
        %s490 = scalar_lea.vmem %s1, %s489
        %p491 = scmp.lt.s32.totalorder %s27, 1
        %s492 = scalar_select %p491, %s27, 1
        %s493 = scalar_lea.vmem %s2, %s492
        %p494 = scmp.lt.s32.totalorder %s27, 1
        %s495 = scalar_select %p494, %s27, 1
        %s496 = smul.addr %s495, 4
        %s497 = smul.addr %s496, 4
        %s498 = scalar_lea.vmem %s3, %s497
        %p499 = scmp.lt.s32.totalorder %s27, 1
        %s500 = scalar_select %p499, %s27, 1
        %s501 = scalar_lea.vmem %s4, %s500
        %p502 = scmp.lt.s32.totalorder %s27, 1
        %s503 = scalar_select %p502, %s27, 1
        %s504 = smul.addr %s503, 4
        %s505 = smul.addr %s504, 4
        %s506 = scalar_lea.vmem %s5, %s505
        %p507 = scmp.lt.s32.totalorder %s27, 1
        %s508 = scalar_select %p507, %s27, 1
        %s509 = scalar_lea.vmem %s6, %s508
        %p510 = scmp.lt.s32.totalorder %s27, 1
        %s511 = scalar_select %p510, %s27, 1
        %s512 = smul.addr %s511, 8
        %s513 = smul.addr %s512, 4
        %s514 = scalar_lea.vmem %s7, %s513
        %p515 = scmp.lt.s32.totalorder %s27, 1
        %s516 = scalar_select %p515, %s27, 1
        %s517 = scalar_lea.vmem %s8, %s516
        %p518 = scmp.lt.s32.totalorder %s26, 1
        %s519 = scalar_select %p518, %s26, 1
        %s520 = smul.addr %s519, 8
        %s521 = scalar_lea.vmem %s10, %s520
        %p523 = scmp.eq.s32.totalorder %s27, 0
        // Predicated region
        $region65: #{vit_forward.4} parent=59 // pred_check
          %p524 = pneg %p523
        $region66: #{vit_forward.4} parent=59 // pred_check_branch
          %526 = sbr.rel (%p524) target = $region68
        $region67: #{vit_forward.4} parent=59 // pred_region
          %v527 = vld [vmem:[%s485] sm:$0xff]
          %v528 = vld [vmem:[%s485 + $0x8] sm:$0xff]
          %v529 = vld [vmem:[%s485 + $0x10] sm:$0xff]
          %vm530 = vcmask 261120
          %531 = vst.msk [vmem:[#allocation2] sm:$0xff] %vm530, %v527
          %532 = vst.msk [vmem:[#allocation2 + $0x8] sm:$0xff] %vm530, %v528
          %533 = vst.msk [vmem:[#allocation2 + $0x10] sm:$0xff] %vm530, %v529
        $region68: #{vit_forward.4} parent=59 // pred_fallthru
          _
        %v534 = vld [vmem:[#allocation2] sm:$0xff]
        %v535 = vld [vmem:[#allocation2 + $0x8] sm:$0xff]
        %v536 = vld [vmem:[#allocation2 + $0x10] sm:$0xff]
        %v537 = vlaneseq
        %v538 = vand.u32 %v537, 127
        %vm539 = vcmp.ge.s32.totalorder %v538, 17
        %v540 = vsel %vm539, -1e+30, 0.0
        %s541 = smul.u32 %s27, 2
        %s542 = smul.u32 %s541, 128
        %s543 = sld [smem:[#allocation3 + %s542]]
        %s544 = sadd.s32 %s542, 1
        %s545 = sld [smem:[#allocation3 + %s544]]
        %vm546 = vcmask 261120
        %v547 = vsel %vm546, %v534, 0.0
        %548 = vadd.xlane.f32.xlu0 %v547
        %v549 = vpop.xlane.xlu0 %548
        %v550 = vsel %vm546, %v535, 0.0
        %551 = vadd.xlane.f32.xlu0 %v550
        %v552 = vpop.xlane.xlu0 %551
        %v553 = vsel %vm546, %v536, 0.0
        %554 = vadd.xlane.f32.xlu0 %v553
        %v555 = vpop.xlane.xlu0 %554
        %v556 = vrcp.pop 32.0
        %v557 = vmul.f32 %v549, %v556
        %v558 = vmul.f32 %v552, %v556
        %v559 = vmul.f32 %v555, %v556
        %v560 = vsub.f32 %v534, %v557
        %v561 = vsub.f32 %v535, %v558
        %v562 = vsub.f32 %v536, %v559
        %v563 = vmul.f32 %v560, %v560
        %v564 = vmul.f32 %v561, %v561
        %v565 = vmul.f32 %v562, %v562
        %v566 = vsel %vm546, %v563, 0.0
        %567 = vadd.xlane.f32.xlu0 %v566
        %v568 = vpop.xlane.xlu0 %567
        %v569 = vsel %vm546, %v564, 0.0
        %570 = vadd.xlane.f32.xlu0 %v569
        %v571 = vpop.xlane.xlu0 %570
        %v572 = vsel %vm546, %v565, 0.0
        %573 = vadd.xlane.f32.xlu0 %v572
        %v574 = vpop.xlane.xlu0 %573
        %v575 = vrcp.pop 31.0
        %v576 = vmul.f32 %v568, %v575
        %v577 = vmul.f32 %v571, %v575
        %v578 = vmul.f32 %v574, %v575
        %v579 = vrsqrt.pop %v576
        %v580 = vmul.f32 %v576, %v579
        %vm581 = vcmp.eq.f32.partialorder %v576, inf
        %v582 = vsel %vm581, %v576, %v580
        %vm583 = vcmp.eq.f32.partialorder %v576, 0.0
        %v584 = vand.u32 %v576, 2147483648
        %v585 = vsel %vm583, %v584, %v582
        %v586 = vrsqrt.pop %v577
        %v587 = vmul.f32 %v577, %v586
        %vm588 = vcmp.eq.f32.partialorder %v577, inf
        %v589 = vsel %vm588, %v577, %v587
        %vm590 = vcmp.eq.f32.partialorder %v577, 0.0
        %v591 = vand.u32 %v577, 2147483648
        %v592 = vsel %vm590, %v591, %v589
        %v593 = vrsqrt.pop %v578
        %v594 = vmul.f32 %v578, %v593
        %vm595 = vcmp.eq.f32.partialorder %v578, inf
        %v596 = vsel %vm595, %v578, %v594
        %vm597 = vcmp.eq.f32.partialorder %v578, 0.0
        %v598 = vand.u32 %v578, 2147483648
        %v599 = vsel %vm597, %v598, %v596
        %v600 = vadd.f32 %v585, 1e-06
        %v601 = vadd.f32 %v592, 1e-06
        %v602 = vadd.f32 %v599, 1e-06
        %v603 = vrcp.pop %v600
        %v604 = vrcp.pop %v601
        %v605 = vrcp.pop %v602
        %v606 = vstv %s543
        %v607 = vmul.f32 %v606, %v560
        %v608 = vmul.f32 %v606, %v561
        %v609 = vmul.f32 %v606, %v562
        %v610 = vmul.f32 %v607, %v603
        %v611 = vmul.f32 %v608, %v604
        %v612 = vmul.f32 %v609, %v605
        %v613 = vstv %s545
        %v614 = vadd.f32 %v610, %v613
        %v615 = vadd.f32 %v611, %v613
        %v616 = vadd.f32 %v612, %v613
        %v617 = vpack.c.bf16 %v615, %v614
        %v618 = vpack.c.bf16 %v616, %v616
        %v619 = vld [vmem:[%s490] sm:$0xf]
        %v620 = vld [vmem:[%s490 + $0x4] sm:$0xf]
        %v621 = vld [vmem:[%s490 + $0x8] sm:$0xf]
        %v622 = vld [vmem:[%s490 + $0xc] sm:$0xf]
        %v623 = vld [vmem:[%s493] sm:$0x1]
        %v625 = vlaneseq
        %v626 = vshrl.u32 %v625, 7
        %v627 = vsub.s32 0, %v626
        %v628 = vrot.slane %v623, %v627
        %v634 = vunpack.c.l.b16 %v619
        %v635 = vunpack.c.l.b16 %v620
        %v636 = vunpack.c.l.b16 %v621
        %v637 = vunpack.c.l.b16 %v622
        %v638 = vpack.c.b16 %v635, %v634
        %v639 = vpack.c.b16 %v637, %v636
        %v643 = vsel %vm546, %v617, 0
        %v646 = vsel %vm546, %v618, 0
        %648 = vmatprep.subr.bf16.mxu0 0
        %649 = vmatpush1.bf16.msra.mxu0 %v638
        %650 = vmatprep.subr.bf16.mxu0 0
        %651 = vmatpush1.bf16.msra.mxu0 %v639
        %652 = vmatprep.subr.bf16.mxu0 0
        %653 = vmatpush1.bf16.msra.mxu0 0
        %654 = vmatprep.subr.bf16.mxu0 0
        %655 = vmatpush1.bf16.msra.mxu0 0
        %656 = vmatprep.subr.bf16.mxu0 0
        %657 = vmatpush1.bf16.msra.mxu0 0
        %658 = vmatprep.subr.bf16.mxu0 0
        %659 = vmatpush1.bf16.msra.mxu0 0
        %660 = vmatprep.subr.bf16.mxu0 0
        %661 = vmatpush1.bf16.msra.mxu0 0
        %662 = vmatprep.subr.bf16.mxu0 0
        %663 = vmatpush1.bf16.msra.mxu0 0
        %664 = vmatprep.subr.bf16.mxu0 0
        %665 = vmatpush1.bf16.msra.mxu0 0
        %666 = vmatprep.subr.bf16.mxu0 0
        %667 = vmatpush1.bf16.msra.mxu0 0
        %668 = vmatprep.subr.bf16.mxu0 0
        %669 = vmatpush1.bf16.msra.mxu0 0
        %670 = vmatprep.subr.bf16.mxu0 0
        %671 = vmatpush1.bf16.msra.mxu0 0
        %672 = vmatprep.subr.bf16.mxu0 0
        %673 = vmatpush1.bf16.msra.mxu0 0
        %674 = vmatprep.subr.bf16.mxu0 0
        %675 = vmatpush1.bf16.msra.mxu0 0
        %676 = vmatprep.subr.bf16.mxu0 0
        %677 = vmatpush1.bf16.msra.mxu0 0
        %678 = vmatprep.subr.bf16.mxu0 0
        %679 = vmatpush1.bf16.msra.mxu0 0
        %680 = vmatprep.mubr.bf16.mxu0 0
        %681 = vmatmul.mubr.bf16.gmra.mrb[0].mxu0 %v643
        %v682 = vpop.f32.mrb[0].mxu0
        %v683 = vadd.f32 %v628, %v682
        %v684 = vpop.f32.mrb[0].mxu0
        %v685 = vpop.f32.mrb[0].mxu0
        %v686 = vadd.f32 %v628, %v685
        %v687 = vpop.f32.mrb[0].mxu0
        %688 = vmatprep.mubr.bf16.mxu0 0
        %689 = vmatmul.mubr.bf16.gmra.mrb[0].mxu0 %v646
        %v690 = vpop.f32.mrb[0].mxu0
        %v691 = vadd.f32 %v628, %v690
        %v692 = vpop.f32.mrb[0].mxu0
        %v693 = vpop.f32.mrb[0].mxu0
        %v694 = vpop.f32.mrb[0].mxu0
        %695 = vdwg.mxu0
        %v696 = vld [vmem:[%s498] sm:$0xf]
        %v697 = vld [vmem:[%s498 + $0x4] sm:$0xf]
        %v698 = vld [vmem:[%s498 + $0x8] sm:$0xf]
        %v699 = vld [vmem:[%s498 + $0xc] sm:$0xf]
        %v700 = vpack.c.bf16 %v686, %v683
        %v701 = vpack.c.bf16 %v691, %v691
        %704 = vrot.lane.b32.xlu0 %v700, 96
        %v705 = vpop.permute.xlu0 %704
        %706 = vrot.lane.b32.xlu0 %v701, 96
        %v707 = vpop.permute.xlu0 %706
        %vm708 = vcmask 64512
        %v710 = vsel %vm708, %v700, 0
        %v713 = vsel %vm708, %v701, 0
        %v716 = vsel %vm708, %v705, 0
        %v719 = vsel %vm708, %v707, 0
        %721 = vmatprep.subr.bf16.mxu0 0
        %722 = vmatpush1.bf16.xpose.msra.mxu0 %v716
        %723 = vmatprep.subr.bf16.mxu0 0
        %724 = vmatpush1.bf16.xpose.msra.mxu0 %v719
        %725 = vmatprep.subr.bf16.mxu0 0
        %726 = vmatpush1.bf16.xpose.msra.mxu0 0
        %727 = vmatprep.subr.bf16.mxu0 0
        %728 = vmatpush1.bf16.xpose.msra.mxu0 0
        %729 = vmatprep.subr.bf16.mxu0 0
        %730 = vmatpush1.bf16.xpose.msra.mxu0 0
        %731 = vmatprep.subr.bf16.mxu0 0
        %732 = vmatpush1.bf16.xpose.msra.mxu0 0
        %733 = vmatprep.subr.bf16.mxu0 0
        %734 = vmatpush1.bf16.xpose.msra.mxu0 0
        %735 = vmatprep.subr.bf16.mxu0 0
        %736 = vmatpush1.bf16.xpose.msra.mxu0 0
        %737 = vmatprep.subr.bf16.mxu0 0
        %738 = vmatpush1.bf16.xpose.msra.mxu0 0
        %739 = vmatprep.subr.bf16.mxu0 0
        %740 = vmatpush1.bf16.xpose.msra.mxu0 0
        %741 = vmatprep.subr.bf16.mxu0 0
        %742 = vmatpush1.bf16.xpose.msra.mxu0 0
        %743 = vmatprep.subr.bf16.mxu0 0
        %744 = vmatpush1.bf16.xpose.msra.mxu0 0
        %745 = vmatprep.subr.bf16.mxu0 0
        %746 = vmatpush1.bf16.xpose.msra.mxu0 0
        %747 = vmatprep.subr.bf16.mxu0 0
        %748 = vmatpush1.bf16.xpose.msra.mxu0 0
        %749 = vmatprep.subr.bf16.mxu0 0
        %750 = vmatpush1.bf16.xpose.msra.mxu0 0
        %751 = vmatprep.subr.bf16.mxu0 0
        %752 = vmatpush1.bf16.xpose.msra.mxu0 0
        %753 = vmatprep.mubr.bf16.mxu0 0
        %754 = vmatmul.mubr.bf16.gmra.mrb[0].mxu0 %v710
        %v755 = vpop.f32.mrb[0].mxu0
        %v756 = vadd.f32 0.0, %v755
        %v757 = vpop.f32.mrb[0].mxu0
        %v758 = vpop.f32.mrb[0].mxu0
        %v759 = vadd.f32 0.0, %v758
        %v760 = vpop.f32.mrb[0].mxu0
        %761 = vmatprep.mubr.bf16.mxu0 0
        %762 = vmatmul.mubr.bf16.gmra.mrb[0].mxu0 %v713
        %v763 = vpop.f32.mrb[0].mxu0
        %v764 = vadd.f32 0.0, %v763
        %v765 = vpop.f32.mrb[0].mxu0
        %v766 = vpop.f32.mrb[0].mxu0
        %v767 = vpop.f32.mrb[0].mxu0
        %768 = vdwg.mxu0
        %v769 = vmul.f32 %v756, 0.35355338
        %v770 = vmul.f32 %v759, 0.35355338
        %v771 = vmul.f32 %v764, 0.35355338
        %v772 = vadd.f32 %v769, %v540
        %v773 = vadd.f32 %v770, %v540
        %v774 = vadd.f32 %v771, %v540
        %vm775 = vcmask 195584
        %v776 = vsel %vm775, %v772, -inf
        %777 = vmax.xlane.f32.xlu0 %v776
        %v778 = vpop.xlane.xlu0 %777
        %v779 = vsel %vm775, %v773, -inf
        %780 = vmax.xlane.f32.xlu0 %v779
        %v781 = vpop.xlane.xlu0 %780
        %v782 = vsel %vm775, %v774, -inf
        %783 = vmax.xlane.f32.xlu0 %v782
        %v784 = vpop.xlane.xlu0 %783
        %v785 = vsub.f32 %v772, %v778
        %v786 = vsub.f32 %v773, %v781
        %v787 = vsub.f32 %v774, %v784
        %v788 = vmul.f32 %v785, 1.442695
        %v789 = vpow.pop %v788
        %v790 = vmul.f32 %v786, 1.442695
        %v791 = vpow.pop %v790
        %v792 = vmul.f32 %v787, 1.442695
        %v793 = vpow.pop %v792
        %v794 = vsel %vm775, %v789, 0.0
        %795 = vadd.xlane.f32.xlu0 %v794
        %v796 = vpop.xlane.xlu0 %795
        %v797 = vsel %vm775, %v791, 0.0
        %798 = vadd.xlane.f32.xlu0 %v797
        %v799 = vpop.xlane.xlu0 %798
        %v800 = vsel %vm775, %v793, 0.0
        %801 = vadd.xlane.f32.xlu0 %v800
        %v802 = vpop.xlane.xlu0 %801
        %v803 = vrcp.pop %v796
        %v804 = vrcp.pop %v799
        %v805 = vrcp.pop %v802
        %v806 = vmul.f32 %v789, %v803
        %v807 = vmul.f32 %v791, %v804
        %v808 = vmul.f32 %v793, %v805
        %v809 = vpack.c.bf16 %v807, %v806
        %v810 = vpack.c.bf16 %v808, %v808
        %811 = vrot.lane.b32.xlu0 %v700, 64
        %v812 = vpop.permute.xlu0 %811
        %813 = vrot.lane.b32.xlu0 %v701, 64
        %v814 = vpop.permute.xlu0 %813
        %v817 = vsel %vm775, %v809, 0
        %v820 = vsel %vm775, %v810, 0
        %vm822 = vcmask 1043456
        %v824 = vsel %vm822, %v814, 0
        %826 = vmatprep.subr.bf16.mxu0 0
        %827 = vmatpush1.bf16.msra.mxu0 %v812
        %828 = vmatprep.subr.bf16.mxu0 0
        %829 = vmatpush1.bf16.msra.mxu0 %v824
        %830 = vmatprep.subr.bf16.mxu0 0
        %831 = vmatpush1.bf16.msra.mxu0 0
        %832 = vmatprep.subr.bf16.mxu0 0
        %833 = vmatpush1.bf16.msra.mxu0 0
        %834 = vmatprep.subr.bf16.mxu0 0
        %835 = vmatpush1.bf16.msra.mxu0 0
        %836 = vmatprep.subr.bf16.mxu0 0
        %837 = vmatpush1.bf16.msra.mxu0 0
        %838 = vmatprep.subr.bf16.mxu0 0
        %839 = vmatpush1.bf16.msra.mxu0 0
        %840 = vmatprep.subr.bf16.mxu0 0
        %841 = vmatpush1.bf16.msra.mxu0 0
        %842 = vmatprep.subr.bf16.mxu0 0
        %843 = vmatpush1.bf16.msra.mxu0 0
        %844 = vmatprep.subr.bf16.mxu0 0
        %845 = vmatpush1.bf16.msra.mxu0 0
        %846 = vmatprep.subr.bf16.mxu0 0
        %847 = vmatpush1.bf16.msra.mxu0 0
        %848 = vmatprep.subr.bf16.mxu0 0
        %849 = vmatpush1.bf16.msra.mxu0 0
        %850 = vmatprep.subr.bf16.mxu0 0
        %851 = vmatpush1.bf16.msra.mxu0 0
        %852 = vmatprep.subr.bf16.mxu0 0
        %853 = vmatpush1.bf16.msra.mxu0 0
        %854 = vmatprep.subr.bf16.mxu0 0
        %855 = vmatpush1.bf16.msra.mxu0 0
        %856 = vmatprep.subr.bf16.mxu0 0
        %857 = vmatpush1.bf16.msra.mxu0 0
        %858 = vmatprep.mubr.bf16.mxu0 0
        %859 = vmatmul.mubr.bf16.gmra.mrb[0].mxu0 %v817
        %v860 = vpop.f32.mrb[0].mxu0
        %v861 = vadd.f32 0.0, %v860
        %v862 = vpop.f32.mrb[0].mxu0
        %v863 = vpop.f32.mrb[0].mxu0
        %v864 = vadd.f32 0.0, %v863
        %v865 = vpop.f32.mrb[0].mxu0
        %866 = vmatprep.mubr.bf16.mxu0 0
        %867 = vmatmul.mubr.bf16.gmra.mrb[0].mxu0 %v820
        %v868 = vpop.f32.mrb[0].mxu0
        %v869 = vadd.f32 0.0, %v868
        %v870 = vpop.f32.mrb[0].mxu0
        %v871 = vpop.f32.mrb[0].mxu0
        %v872 = vpop.f32.mrb[0].mxu0
        %873 = vdwg.mxu0
        %v874 = vpack.c.bf16 %v864, %v861
        %v875 = vpack.c.bf16 %v869, %v869
        %876 = vrot.lane.b32.xlu0 %v700, 120
        %v877 = vpop.permute.xlu0 %876
        %878 = vrot.lane.b32.xlu0 %v701, 120
        %v879 = vpop.permute.xlu0 %878
        %880 = vrot.lane.b32.xlu0 %v700, 88
        %v881 = vpop.permute.xlu0 %880
        %882 = vrot.lane.b32.xlu0 %v701, 88
        %v883 = vpop.permute.xlu0 %882
        %v885 = vsel %vm708, %v877, 0
        %v888 = vsel %vm708, %v879, 0
        %v891 = vsel %vm708, %v881, 0
        %v894 = vsel %vm708, %v883, 0
        %896 = vmatprep.subr.bf16.mxu0 0
        %897 = vmatpush1.bf16.xpose.msra.mxu0 %v891
        %898 = vmatprep.subr.bf16.mxu0 0
        %899 = vmatpush1.bf16.xpose.msra.mxu0 %v894
        %900 = vmatprep.subr.bf16.mxu0 0
        %901 = vmatpush1.bf16.xpose.msra.mxu0 0
        %902 = vmatprep.subr.bf16.mxu0 0
        %903 = vmatpush1.bf16.xpose.msra.mxu0 0
        %904 = vmatprep.subr.bf16.mxu0 0
        %905 = vmatpush1.bf16.xpose.msra.mxu0 0
        %906 = vmatprep.subr.bf16.mxu0 0
        %907 = vmatpush1.bf16.xpose.msra.mxu0 0
        %908 = vmatprep.subr.bf16.mxu0 0
        %909 = vmatpush1.bf16.xpose.msra.mxu0 0
        %910 = vmatprep.subr.bf16.mxu0 0
        %911 = vmatpush1.bf16.xpose.msra.mxu0 0
        %912 = vmatprep.subr.bf16.mxu0 0
        %913 = vmatpush1.bf16.xpose.msra.mxu0 0
        %914 = vmatprep.subr.bf16.mxu0 0
        %915 = vmatpush1.bf16.xpose.msra.mxu0 0
        %916 = vmatprep.subr.bf16.mxu0 0
        %917 = vmatpush1.bf16.xpose.msra.mxu0 0
        %918 = vmatprep.subr.bf16.mxu0 0
        %919 = vmatpush1.bf16.xpose.msra.mxu0 0
        %920 = vmatprep.subr.bf16.mxu0 0
        %921 = vmatpush1.bf16.xpose.msra.mxu0 0
        %922 = vmatprep.subr.bf16.mxu0 0
        %923 = vmatpush1.bf16.xpose.msra.mxu0 0
        %924 = vmatprep.subr.bf16.mxu0 0
        %925 = vmatpush1.bf16.xpose.msra.mxu0 0
        %926 = vmatprep.subr.bf16.mxu0 0
        %927 = vmatpush1.bf16.xpose.msra.mxu0 0
        %928 = vmatprep.mubr.bf16.mxu0 0
        %929 = vmatmul.mubr.bf16.gmra.mrb[0].mxu0 %v885
        %v930 = vpop.f32.mrb[0].mxu0
        %v931 = vadd.f32 0.0, %v930
        %v932 = vpop.f32.mrb[0].mxu0
        %v933 = vpop.f32.mrb[0].mxu0
        %v934 = vadd.f32 0.0, %v933
        %v935 = vpop.f32.mrb[0].mxu0
        %936 = vmatprep.mubr.bf16.mxu0 0
        %937 = vmatmul.mubr.bf16.gmra.mrb[0].mxu0 %v888
        %v938 = vpop.f32.mrb[0].mxu0
        %v939 = vadd.f32 0.0, %v938
        %v940 = vpop.f32.mrb[0].mxu0
        %v941 = vpop.f32.mrb[0].mxu0
        %v942 = vpop.f32.mrb[0].mxu0
        %943 = vdwg.mxu0
        %v944 = vmul.f32 %v931, 0.35355338
        %v945 = vmul.f32 %v934, 0.35355338
        %v946 = vmul.f32 %v939, 0.35355338
        %v947 = vadd.f32 %v944, %v540
        %v948 = vadd.f32 %v945, %v540
        %v949 = vadd.f32 %v946, %v540
        %v950 = vsel %vm775, %v947, -inf
        %951 = vmax.xlane.f32.xlu0 %v950
        %v952 = vpop.xlane.xlu0 %951
        %v953 = vsel %vm775, %v948, -inf
        %954 = vmax.xlane.f32.xlu0 %v953
        %v955 = vpop.xlane.xlu0 %954
        %v956 = vsel %vm775, %v949, -inf
        %957 = vmax.xlane.f32.xlu0 %v956
        %v958 = vpop.xlane.xlu0 %957
        %v959 = vsub.f32 %v947, %v952
        %v960 = vsub.f32 %v948, %v955
        %v961 = vsub.f32 %v949, %v958
        %v962 = vmul.f32 %v959, 1.442695
        %v963 = vpow.pop %v962
        %v964 = vmul.f32 %v960, 1.442695
        %v965 = vpow.pop %v964
        %v966 = vmul.f32 %v961, 1.442695
        %v967 = vpow.pop %v966
        %v968 = vsel %vm775, %v963, 0.0
        %969 = vadd.xlane.f32.xlu0 %v968
        %v970 = vpop.xlane.xlu0 %969
        %v971 = vsel %vm775, %v965, 0.0
        %972 = vadd.xlane.f32.xlu0 %v971
        %v973 = vpop.xlane.xlu0 %972
        %v974 = vsel %vm775, %v967, 0.0
        %975 = vadd.xlane.f32.xlu0 %v974
        %v976 = vpop.xlane.xlu0 %975
        %v977 = vrcp.pop %v970
        %v978 = vrcp.pop %v973
        %v979 = vrcp.pop %v976
        %v980 = vmul.f32 %v963, %v977
        %v981 = vmul.f32 %v965, %v978
        %v982 = vmul.f32 %v967, %v979
        %v983 = vpack.c.bf16 %v981, %v980
        %v984 = vpack.c.bf16 %v982, %v982
        %985 = vrot.lane.b32.xlu0 %v700, 56
        %v986 = vpop.permute.xlu0 %985
        %987 = vrot.lane.b32.xlu0 %v701, 56
        %v988 = vpop.permute.xlu0 %987
        %v991 = vsel %vm775, %v983, 0
        %v994 = vsel %vm775, %v984, 0
        %v997 = vsel %vm822, %v988, 0
        %999 = vmatprep.subr.bf16.mxu0 0
        %1000 = vmatpush1.bf16.msra.mxu0 %v986
        %1001 = vmatprep.subr.bf16.mxu0 0
        %1002 = vmatpush1.bf16.msra.mxu0 %v997
        %1003 = vmatprep.subr.bf16.mxu0 0
        %1004 = vmatpush1.bf16.msra.mxu0 0
        %1005 = vmatprep.subr.bf16.mxu0 0
        %1006 = vmatpush1.bf16.msra.mxu0 0
        %1007 = vmatprep.subr.bf16.mxu0 0
        %1008 = vmatpush1.bf16.msra.mxu0 0
        %1009 = vmatprep.subr.bf16.mxu0 0
        %1010 = vmatpush1.bf16.msra.mxu0 0
        %1011 = vmatprep.subr.bf16.mxu0 0
        %1012 = vmatpush1.bf16.msra.mxu0 0
        %1013 = vmatprep.subr.bf16.mxu0 0
        %1014 = vmatpush1.bf16.msra.mxu0 0
        %1015 = vmatprep.subr.bf16.mxu0 0
        %1016 = vmatpush1.bf16.msra.mxu0 0
        %1017 = vmatprep.subr.bf16.mxu0 0
        %1018 = vmatpush1.bf16.msra.mxu0 0
        %1019 = vmatprep.subr.bf16.mxu0 0
        %1020 = vmatpush1.bf16.msra.mxu0 0
        %1021 = vmatprep.subr.bf16.mxu0 0
        %1022 = vmatpush1.bf16.msra.mxu0 0
        %1023 = vmatprep.subr.bf16.mxu0 0
        %1024 = vmatpush1.bf16.msra.mxu0 0
        %1025 = vmatprep.subr.bf16.mxu0 0
        %1026 = vmatpush1.bf16.msra.mxu0 0
        %1027 = vmatprep.subr.bf16.mxu0 0
        %1028 = vmatpush1.bf16.msra.mxu0 0
        %1029 = vmatprep.subr.bf16.mxu0 0
        %1030 = vmatpush1.bf16.msra.mxu0 0
        %1031 = vmatprep.mubr.bf16.mxu0 0
        %1032 = vmatmul.mubr.bf16.gmra.mrb[0].mxu0 %v991
        %v1033 = vpop.f32.mrb[0].mxu0
        %v1034 = vadd.f32 0.0, %v1033
        %v1035 = vpop.f32.mrb[0].mxu0
        %v1036 = vpop.f32.mrb[0].mxu0
        %v1037 = vadd.f32 0.0, %v1036
        %v1038 = vpop.f32.mrb[0].mxu0
        %1039 = vmatprep.mubr.bf16.mxu0 0
        %1040 = vmatmul.mubr.bf16.gmra.mrb[0].mxu0 %v994
        %v1041 = vpop.f32.mrb[0].mxu0
        %v1042 = vadd.f32 0.0, %v1041
        %v1043 = vpop.f32.mrb[0].mxu0
        %v1044 = vpop.f32.mrb[0].mxu0
        %v1045 = vpop.f32.mrb[0].mxu0
        %1046 = vdwg.mxu0
        %v1047 = vpack.c.bf16 %v1037, %v1034
        %v1048 = vpack.c.bf16 %v1042, %v1042
        %v1050 = vsel %vm708, %v1047, 0
        %v1053 = vsel %vm708, %v1048, 0
        %v1056 = vsel %vm822, %v697, 0
        %1058 = vmatprep.subr.bf16.mxu0 0
        %1059 = vmatpush1.bf16.msra.mxu0 %v1056
        %1060 = vmatprep.subr.bf16.mxu0 0
        %1061 = vmatpush1.bf16.msra.mxu0 0
        %1062 = vmatprep.subr.bf16.mxu0 0
        %1063 = vmatpush1.bf16.msra.mxu0 0
        %1064 = vmatprep.subr.bf16.mxu0 0
        %1065 = vmatpush1.bf16.msra.mxu0 0
        %1066 = vmatprep.subr.bf16.mxu0 0
        %1067 = vmatpush1.bf16.msra.mxu0 0
        %1068 = vmatprep.subr.bf16.mxu0 0
        %1069 = vmatpush1.bf16.msra.mxu0 0
        %1070 = vmatprep.subr.bf16.mxu0 0
        %1071 = vmatpush1.bf16.msra.mxu0 0
        %1072 = vmatprep.subr.bf16.mxu0 0
        %1073 = vmatpush1.bf16.msra.mxu0 0
        %1074 = vmatprep.subr.bf16.mxu0 0
        %1075 = vmatpush1.bf16.msra.mxu0 0
        %1076 = vmatprep.subr.bf16.mxu0 0
        %1077 = vmatpush1.bf16.msra.mxu0 0
        %1078 = vmatprep.subr.bf16.mxu0 0
        %1079 = vmatpush1.bf16.msra.mxu0 0
        %1080 = vmatprep.subr.bf16.mxu0 0
        %1081 = vmatpush1.bf16.msra.mxu0 0
        %1082 = vmatprep.subr.bf16.mxu0 0
        %1083 = vmatpush1.bf16.msra.mxu0 0
        %1084 = vmatprep.subr.bf16.mxu0 0
        %1085 = vmatpush1.bf16.msra.mxu0 0
        %1086 = vmatprep.subr.bf16.mxu0 0
        %1087 = vmatpush1.bf16.msra.mxu0 0
        %1088 = vmatprep.subr.bf16.mxu0 0
        %1089 = vmatpush1.bf16.msra.mxu0 0
        %1090 = vmatprep.mubr.bf16.mxu0 0
        %1091 = vmatmul.mubr.bf16.gmra.mrb[0].mxu0 %v1050
        %v1092 = vpop.f32.mrb[0].mxu0
        %v1093 = vadd.f32 0.0, %v1092
        %v1094 = vpop.f32.mrb[0].mxu0
        %v1095 = vpop.f32.mrb[0].mxu0
        %v1096 = vadd.f32 0.0, %v1095
        %v1097 = vpop.f32.mrb[0].mxu0
        %1098 = vmatprep.mubr.bf16.mxu0 0
        %1099 = vmatmul.mubr.bf16.gmra.mrb[0].mxu0 %v1053
        %v1100 = vpop.f32.mrb[0].mxu0
        %v1101 = vadd.f32 0.0, %v1100
        %v1102 = vpop.f32.mrb[0].mxu0
        %v1103 = vpop.f32.mrb[0].mxu0
        %v1104 = vpop.f32.mrb[0].mxu0
        %1105 = vdwg.mxu0
        %v1107 = vsel %vm708, %v874, 0
        %v1110 = vsel %vm708, %v875, 0
        %v1113 = vsel %vm822, %v696, 0
        %1115 = vmatprep.subr.bf16.mxu0 0
        %1116 = vmatpush1.bf16.msra.mxu0 %v1113
        %1117 = vmatprep.subr.bf16.mxu0 0
        %1118 = vmatpush1.bf16.msra.mxu0 0
        %1119 = vmatprep.subr.bf16.mxu0 0
        %1120 = vmatpush1.bf16.msra.mxu0 0
        %1121 = vmatprep.subr.bf16.mxu0 0
        %1122 = vmatpush1.bf16.msra.mxu0 0
        %1123 = vmatprep.subr.bf16.mxu0 0
        %1124 = vmatpush1.bf16.msra.mxu0 0
        %1125 = vmatprep.subr.bf16.mxu0 0
        %1126 = vmatpush1.bf16.msra.mxu0 0
        %1127 = vmatprep.subr.bf16.mxu0 0
        %1128 = vmatpush1.bf16.msra.mxu0 0
        %1129 = vmatprep.subr.bf16.mxu0 0
        %1130 = vmatpush1.bf16.msra.mxu0 0
        %1131 = vmatprep.subr.bf16.mxu0 0
        %1132 = vmatpush1.bf16.msra.mxu0 0
        %1133 = vmatprep.subr.bf16.mxu0 0
        %1134 = vmatpush1.bf16.msra.mxu0 0
        %1135 = vmatprep.subr.bf16.mxu0 0
        %1136 = vmatpush1.bf16.msra.mxu0 0
        %1137 = vmatprep.subr.bf16.mxu0 0
        %1138 = vmatpush1.bf16.msra.mxu0 0
        %1139 = vmatprep.subr.bf16.mxu0 0
        %1140 = vmatpush1.bf16.msra.mxu0 0
        %1141 = vmatprep.subr.bf16.mxu0 0
        %1142 = vmatpush1.bf16.msra.mxu0 0
        %1143 = vmatprep.subr.bf16.mxu0 0
        %1144 = vmatpush1.bf16.msra.mxu0 0
        %1145 = vmatprep.subr.bf16.mxu0 0
        %1146 = vmatpush1.bf16.msra.mxu0 0
        %1147 = vmatprep.mubr.bf16.mxu0 0
        %1148 = vmatmul.mubr.bf16.gmra.mrb[0].mxu0 %v1107
        %v1149 = vpop.f32.mrb[0].mxu0
        %v1150 = vadd.f32 %v1093, %v1149
        %v1151 = vpop.f32.mrb[0].mxu0
        %v1152 = vpop.f32.mrb[0].mxu0
        %v1153 = vadd.f32 %v1096, %v1152
        %v1154 = vpop.f32.mrb[0].mxu0
        %1155 = vmatprep.mubr.bf16.mxu0 0
        %1156 = vmatmul.mubr.bf16.gmra.mrb[0].mxu0 %v1110
        %v1157 = vpop.f32.mrb[0].mxu0
        %v1158 = vadd.f32 %v1101, %v1157
        %v1159 = vpop.f32.mrb[0].mxu0
        %v1160 = vpop.f32.mrb[0].mxu0
        %v1161 = vpop.f32.mrb[0].mxu0
        %1162 = vdwg.mxu0
        %1163 = vrot.lane.b32.xlu0 %v700, 112
        %v1164 = vpop.permute.xlu0 %1163
        %1165 = vrot.lane.b32.xlu0 %v701, 112
        %v1166 = vpop.permute.xlu0 %1165
        %1167 = vrot.lane.b32.xlu0 %v700, 80
        %v1168 = vpop.permute.xlu0 %1167
        %1169 = vrot.lane.b32.xlu0 %v701, 80
        %v1170 = vpop.permute.xlu0 %1169
        %v1172 = vsel %vm708, %v1164, 0
        %v1175 = vsel %vm708, %v1166, 0
        %v1178 = vsel %vm708, %v1168, 0
        %v1181 = vsel %vm708, %v1170, 0
        %1183 = vmatprep.subr.bf16.mxu0 0
        %1184 = vmatpush1.bf16.xpose.msra.mxu0 %v1178
        %1185 = vmatprep.subr.bf16.mxu0 0
        %1186 = vmatpush1.bf16.xpose.msra.mxu0 %v1181
        %1187 = vmatprep.subr.bf16.mxu0 0
        %1188 = vmatpush1.bf16.xpose.msra.mxu0 0
        %1189 = vmatprep.subr.bf16.mxu0 0
        %1190 = vmatpush1.bf16.xpose.msra.mxu0 0
        %1191 = vmatprep.subr.bf16.mxu0 0
        %1192 = vmatpush1.bf16.xpose.msra.mxu0 0
        %1193 = vmatprep.subr.bf16.mxu0 0
        %1194 = vmatpush1.bf16.xpose.msra.mxu0 0
        %1195 = vmatprep.subr.bf16.mxu0 0
        %1196 = vmatpush1.bf16.xpose.msra.mxu0 0
        %1197 = vmatprep.subr.bf16.mxu0 0
        %1198 = vmatpush1.bf16.xpose.msra.mxu0 0
        %1199 = vmatprep.subr.bf16.mxu0 0
        %1200 = vmatpush1.bf16.xpose.msra.mxu0 0
        %1201 = vmatprep.subr.bf16.mxu0 0
        %1202 = vmatpush1.bf16.xpose.msra.mxu0 0
        %1203 = vmatprep.subr.bf16.mxu0 0
        %1204 = vmatpush1.bf16.xpose.msra.mxu0 0
        %1205 = vmatprep.subr.bf16.mxu0 0
        %1206 = vmatpush1.bf16.xpose.msra.mxu0 0
        %1207 = vmatprep.subr.bf16.mxu0 0
        %1208 = vmatpush1.bf16.xpose.msra.mxu0 0
        %1209 = vmatprep.subr.bf16.mxu0 0
        %1210 = vmatpush1.bf16.xpose.msra.mxu0 0
        %1211 = vmatprep.subr.bf16.mxu0 0
        %1212 = vmatpush1.bf16.xpose.msra.mxu0 0
        %1213 = vmatprep.subr.bf16.mxu0 0
        %1214 = vmatpush1.bf16.xpose.msra.mxu0 0
        %1215 = vmatprep.mubr.bf16.mxu0 0
        %1216 = vmatmul.mubr.bf16.gmra.mrb[0].mxu0 %v1172
        %v1217 = vpop.f32.mrb[0].mxu0
        %v1218 = vadd.f32 0.0, %v1217
        %v1219 = vpop.f32.mrb[0].mxu0
        %v1220 = vpop.f32.mrb[0].mxu0
        %v1221 = vadd.f32 0.0, %v1220
        %v1222 = vpop.f32.mrb[0].mxu0
        %1223 = vmatprep.mubr.bf16.mxu0 0
        %1224 = vmatmul.mubr.bf16.gmra.mrb[0].mxu0 %v1175
        %v1225 = vpop.f32.mrb[0].mxu0
        %v1226 = vadd.f32 0.0, %v1225
        %v1227 = vpop.f32.mrb[0].mxu0
        %v1228 = vpop.f32.mrb[0].mxu0
        %v1229 = vpop.f32.mrb[0].mxu0
        %1230 = vdwg.mxu0
        %v1231 = vmul.f32 %v1218, 0.35355338
        %v1232 = vmul.f32 %v1221, 0.35355338
        %v1233 = vmul.f32 %v1226, 0.35355338
        %v1234 = vadd.f32 %v1231, %v540
        %v1235 = vadd.f32 %v1232, %v540
        %v1236 = vadd.f32 %v1233, %v540
        %v1237 = vsel %vm775, %v1234, -inf
        %1238 = vmax.xlane.f32.xlu0 %v1237
        %v1239 = vpop.xlane.xlu0 %1238
        %v1240 = vsel %vm775, %v1235, -inf
        %1241 = vmax.xlane.f32.xlu0 %v1240
        %v1242 = vpop.xlane.xlu0 %1241
        %v1243 = vsel %vm775, %v1236, -inf
        %1244 = vmax.xlane.f32.xlu0 %v1243
        %v1245 = vpop.xlane.xlu0 %1244
        %v1246 = vsub.f32 %v1234, %v1239
        %v1247 = vsub.f32 %v1235, %v1242
        %v1248 = vsub.f32 %v1236, %v1245
        %v1249 = vmul.f32 %v1246, 1.442695
        %v1250 = vpow.pop %v1249
        %v1251 = vmul.f32 %v1247, 1.442695
        %v1252 = vpow.pop %v1251
        %v1253 = vmul.f32 %v1248, 1.442695
        %v1254 = vpow.pop %v1253
        %v1255 = vsel %vm775, %v1250, 0.0
        %1256 = vadd.xlane.f32.xlu0 %v1255
        %v1257 = vpop.xlane.xlu0 %1256
        %v1258 = vsel %vm775, %v1252, 0.0
        %1259 = vadd.xlane.f32.xlu0 %v1258
        %v1260 = vpop.xlane.xlu0 %1259
        %v1261 = vsel %vm775, %v1254, 0.0
        %1262 = vadd.xlane.f32.xlu0 %v1261
        %v1263 = vpop.xlane.xlu0 %1262
        %v1264 = vrcp.pop %v1257
        %v1265 = vrcp.pop %v1260
        %v1266 = vrcp.pop %v1263
        %v1267 = vmul.f32 %v1250, %v1264
        %v1268 = vmul.f32 %v1252, %v1265
        %v1269 = vmul.f32 %v1254, %v1266
        %v1270 = vpack.c.bf16 %v1268, %v1267
        %v1271 = vpack.c.bf16 %v1269, %v1269
        %1272 = vrot.lane.b32.xlu0 %v700, 48
        %v1273 = vpop.permute.xlu0 %1272
        %1274 = vrot.lane.b32.xlu0 %v701, 48
        %v1275 = vpop.permute.xlu0 %1274
        %v1278 = vsel %vm775, %v1270, 0
        %v1281 = vsel %vm775, %v1271, 0
        %v1284 = vsel %vm822, %v1275, 0
        %1286 = vmatprep.subr.bf16.mxu0 0
        %1287 = vmatpush1.bf16.msra.mxu0 %v1273
        %1288 = vmatprep.subr.bf16.mxu0 0
        %1289 = vmatpush1.bf16.msra.mxu0 %v1284
        %1290 = vmatprep.subr.bf16.mxu0 0
        %1291 = vmatpush1.bf16.msra.mxu0 0
        %1292 = vmatprep.subr.bf16.mxu0 0
        %1293 = vmatpush1.bf16.msra.mxu0 0
        %1294 = vmatprep.subr.bf16.mxu0 0
        %1295 = vmatpush1.bf16.msra.mxu0 0
        %1296 = vmatprep.subr.bf16.mxu0 0
        %1297 = vmatpush1.bf16.msra.mxu0 0
        %1298 = vmatprep.subr.bf16.mxu0 0
        %1299 = vmatpush1.bf16.msra.mxu0 0
        %1300 = vmatprep.subr.bf16.mxu0 0
        %1301 = vmatpush1.bf16.msra.mxu0 0
        %1302 = vmatprep.subr.bf16.mxu0 0
        %1303 = vmatpush1.bf16.msra.mxu0 0
        %1304 = vmatprep.subr.bf16.mxu0 0
        %1305 = vmatpush1.bf16.msra.mxu0 0
        %1306 = vmatprep.subr.bf16.mxu0 0
        %1307 = vmatpush1.bf16.msra.mxu0 0
        %1308 = vmatprep.subr.bf16.mxu0 0
        %1309 = vmatpush1.bf16.msra.mxu0 0
        %1310 = vmatprep.subr.bf16.mxu0 0
        %1311 = vmatpush1.bf16.msra.mxu0 0
        %1312 = vmatprep.subr.bf16.mxu0 0
        %1313 = vmatpush1.bf16.msra.mxu0 0
        %1314 = vmatprep.subr.bf16.mxu0 0
        %1315 = vmatpush1.bf16.msra.mxu0 0
        %1316 = vmatprep.subr.bf16.mxu0 0
        %1317 = vmatpush1.bf16.msra.mxu0 0
        %1318 = vmatprep.mubr.bf16.mxu0 0
        %1319 = vmatmul.mubr.bf16.gmra.mrb[0].mxu0 %v1278
        %v1320 = vpop.f32.mrb[0].mxu0
        %v1321 = vadd.f32 0.0, %v1320
        %v1322 = vpop.f32.mrb[0].mxu0
        %v1323 = vpop.f32.mrb[0].mxu0
        %v1324 = vadd.f32 0.0, %v1323
        %v1325 = vpop.f32.mrb[0].mxu0
        %1326 = vmatprep.mubr.bf16.mxu0 0
        %1327 = vmatmul.mubr.bf16.gmra.mrb[0].mxu0 %v1281
        %v1328 = vpop.f32.mrb[0].mxu0
        %v1329 = vadd.f32 0.0, %v1328
        %v1330 = vpop.f32.mrb[0].mxu0
        %v1331 = vpop.f32.mrb[0].mxu0
        %v1332 = vpop.f32.mrb[0].mxu0
        %1333 = vdwg.mxu0
        %v1334 = vpack.c.bf16 %v1324, %v1321
        %v1335 = vpack.c.bf16 %v1329, %v1329
        %v1337 = vsel %vm708, %v1334, 0
        %v1340 = vsel %vm708, %v1335, 0
        %v1343 = vsel %vm822, %v698, 0
        %1345 = vmatprep.subr.bf16.mxu0 0
        %1346 = vmatpush1.bf16.msra.mxu0 %v1343
        %1347 = vmatprep.subr.bf16.mxu0 0
        %1348 = vmatpush1.bf16.msra.mxu0 0
        %1349 = vmatprep.subr.bf16.mxu0 0
        %1350 = vmatpush1.bf16.msra.mxu0 0
        %1351 = vmatprep.subr.bf16.mxu0 0
        %1352 = vmatpush1.bf16.msra.mxu0 0
        %1353 = vmatprep.subr.bf16.mxu0 0
        %1354 = vmatpush1.bf16.msra.mxu0 0
        %1355 = vmatprep.subr.bf16.mxu0 0
        %1356 = vmatpush1.bf16.msra.mxu0 0
        %1357 = vmatprep.subr.bf16.mxu0 0
        %1358 = vmatpush1.bf16.msra.mxu0 0
        %1359 = vmatprep.subr.bf16.mxu0 0
        %1360 = vmatpush1.bf16.msra.mxu0 0
        %1361 = vmatprep.subr.bf16.mxu0 0
        %1362 = vmatpush1.bf16.msra.mxu0 0
        %1363 = vmatprep.subr.bf16.mxu0 0
        %1364 = vmatpush1.bf16.msra.mxu0 0
        %1365 = vmatprep.subr.bf16.mxu0 0
        %1366 = vmatpush1.bf16.msra.mxu0 0
        %1367 = vmatprep.subr.bf16.mxu0 0
        %1368 = vmatpush1.bf16.msra.mxu0 0
        %1369 = vmatprep.subr.bf16.mxu0 0
        %1370 = vmatpush1.bf16.msra.mxu0 0
        %1371 = vmatprep.subr.bf16.mxu0 0
        %1372 = vmatpush1.bf16.msra.mxu0 0
        %1373 = vmatprep.subr.bf16.mxu0 0
        %1374 = vmatpush1.bf16.msra.mxu0 0
        %1375 = vmatprep.subr.bf16.mxu0 0
        %1376 = vmatpush1.bf16.msra.mxu0 0
        %1377 = vmatprep.mubr.bf16.mxu0 0
        %1378 = vmatmul.mubr.bf16.gmra.mrb[0].mxu0 %v1337
        %v1379 = vpop.f32.mrb[0].mxu0
        %v1380 = vadd.f32 0.0, %v1379
        %v1381 = vpop.f32.mrb[0].mxu0
        %v1382 = vpop.f32.mrb[0].mxu0
        %v1383 = vadd.f32 0.0, %v1382
        %v1384 = vpop.f32.mrb[0].mxu0
        %1385 = vmatprep.mubr.bf16.mxu0 0
        %1386 = vmatmul.mubr.bf16.gmra.mrb[0].mxu0 %v1340
        %v1387 = vpop.f32.mrb[0].mxu0
        %v1388 = vadd.f32 0.0, %v1387
        %v1389 = vpop.f32.mrb[0].mxu0
        %v1390 = vpop.f32.mrb[0].mxu0
        %v1391 = vpop.f32.mrb[0].mxu0
        %1392 = vdwg.mxu0
        %v1393 = vadd.f32 %v1150, %v1380
        %v1394 = vadd.f32 %v1153, %v1383
        %v1395 = vadd.f32 %v1158, %v1388
        %1396 = vrot.lane.b32.xlu0 %v700, 104
        %v1397 = vpop.permute.xlu0 %1396
        %1398 = vrot.lane.b32.xlu0 %v701, 104
        %v1399 = vpop.permute.xlu0 %1398
        %1400 = vrot.lane.b32.xlu0 %v700, 72
        %v1401 = vpop.permute.xlu0 %1400
        %1402 = vrot.lane.b32.xlu0 %v701, 72
        %v1403 = vpop.permute.xlu0 %1402
        %v1405 = vsel %vm708, %v1397, 0
        %v1408 = vsel %vm708, %v1399, 0
        %v1411 = vsel %vm708, %v1401, 0
        %v1414 = vsel %vm708, %v1403, 0
        %1416 = vmatprep.subr.bf16.mxu0 0
        %1417 = vmatpush1.bf16.xpose.msra.mxu0 %v1411
        %1418 = vmatprep.subr.bf16.mxu0 0
        %1419 = vmatpush1.bf16.xpose.msra.mxu0 %v1414
        %1420 = vmatprep.subr.bf16.mxu0 0
        %1421 = vmatpush1.bf16.xpose.msra.mxu0 0
        %1422 = vmatprep.subr.bf16.mxu0 0
        %1423 = vmatpush1.bf16.xpose.msra.mxu0 0
        %1424 = vmatprep.subr.bf16.mxu0 0
        %1425 = vmatpush1.bf16.xpose.msra.mxu0 0
        %1426 = vmatprep.subr.bf16.mxu0 0
        %1427 = vmatpush1.bf16.xpose.msra.mxu0 0
        %1428 = vmatprep.subr.bf16.mxu0 0
        %1429 = vmatpush1.bf16.xpose.msra.mxu0 0
        %1430 = vmatprep.subr.bf16.mxu0 0
        %1431 = vmatpush1.bf16.xpose.msra.mxu0 0
        %1432 = vmatprep.subr.bf16.mxu0 0
        %1433 = vmatpush1.bf16.xpose.msra.mxu0 0
        %1434 = vmatprep.subr.bf16.mxu0 0
        %1435 = vmatpush1.bf16.xpose.msra.mxu0 0
        %1436 = vmatprep.subr.bf16.mxu0 0
        %1437 = vmatpush1.bf16.xpose.msra.mxu0 0
        %1438 = vmatprep.subr.bf16.mxu0 0
        %1439 = vmatpush1.bf16.xpose.msra.mxu0 0
        %1440 = vmatprep.subr.bf16.mxu0 0
        %1441 = vmatpush1.bf16.xpose.msra.mxu0 0
        %1442 = vmatprep.subr.bf16.mxu0 0
        %1443 = vmatpush1.bf16.xpose.msra.mxu0 0
        %1444 = vmatprep.subr.bf16.mxu0 0
        %1445 = vmatpush1.bf16.xpose.msra.mxu0 0
        %1446 = vmatprep.subr.bf16.mxu0 0
        %1447 = vmatpush1.bf16.xpose.msra.mxu0 0
        %1448 = vmatprep.mubr.bf16.mxu0 0
        %1449 = vmatmul.mubr.bf16.gmra.mrb[0].mxu0 %v1405
        %v1450 = vpop.f32.mrb[0].mxu0
        %v1451 = vadd.f32 0.0, %v1450
        %v1452 = vpop.f32.mrb[0].mxu0
        %v1453 = vpop.f32.mrb[0].mxu0
        %v1454 = vadd.f32 0.0, %v1453
        %v1455 = vpop.f32.mrb[0].mxu0
        %1456 = vmatprep.mubr.bf16.mxu0 0
        %1457 = vmatmul.mubr.bf16.gmra.mrb[0].mxu0 %v1408
        %v1458 = vpop.f32.mrb[0].mxu0
        %v1459 = vadd.f32 0.0, %v1458
        %v1460 = vpop.f32.mrb[0].mxu0
        %v1461 = vpop.f32.mrb[0].mxu0
        %v1462 = vpop.f32.mrb[0].mxu0
        %1463 = vdwg.mxu0
        %v1464 = vmul.f32 %v1451, 0.35355338
        %v1465 = vmul.f32 %v1454, 0.35355338
        %v1466 = vmul.f32 %v1459, 0.35355338
        %v1467 = vadd.f32 %v1464, %v540
        %v1468 = vadd.f32 %v1465, %v540
        %v1469 = vadd.f32 %v1466, %v540
        %v1470 = vsel %vm775, %v1467, -inf
        %1471 = vmax.xlane.f32.xlu0 %v1470
        %v1472 = vpop.xlane.xlu0 %1471
        %v1473 = vsel %vm775, %v1468, -inf
        %1474 = vmax.xlane.f32.xlu0 %v1473
        %v1475 = vpop.xlane.xlu0 %1474
        %v1476 = vsel %vm775, %v1469, -inf
        %1477 = vmax.xlane.f32.xlu0 %v1476
        %v1478 = vpop.xlane.xlu0 %1477
        %v1479 = vsub.f32 %v1467, %v1472
        %v1480 = vsub.f32 %v1468, %v1475
        %v1481 = vsub.f32 %v1469, %v1478
        %v1482 = vmul.f32 %v1479, 1.442695
        %v1483 = vpow.pop %v1482
        %v1484 = vmul.f32 %v1480, 1.442695
        %v1485 = vpow.pop %v1484
        %v1486 = vmul.f32 %v1481, 1.442695
        %v1487 = vpow.pop %v1486
        %v1488 = vsel %vm775, %v1483, 0.0
        %1489 = vadd.xlane.f32.xlu0 %v1488
        %v1490 = vpop.xlane.xlu0 %1489
        %v1491 = vsel %vm775, %v1485, 0.0
        %1492 = vadd.xlane.f32.xlu0 %v1491
        %v1493 = vpop.xlane.xlu0 %1492
        %v1494 = vsel %vm775, %v1487, 0.0
        %1495 = vadd.xlane.f32.xlu0 %v1494
        %v1496 = vpop.xlane.xlu0 %1495
        %v1497 = vrcp.pop %v1490
        %v1498 = vrcp.pop %v1493
        %v1499 = vrcp.pop %v1496
        %v1500 = vmul.f32 %v1483, %v1497
        %v1501 = vmul.f32 %v1485, %v1498
        %v1502 = vmul.f32 %v1487, %v1499
        %v1503 = vpack.c.bf16 %v1501, %v1500
        %v1504 = vpack.c.bf16 %v1502, %v1502
        %1505 = vrot.lane.b32.xlu0 %v700, 40
        %v1506 = vpop.permute.xlu0 %1505
        %1507 = vrot.lane.b32.xlu0 %v701, 40
        %v1508 = vpop.permute.xlu0 %1507
        %v1511 = vsel %vm775, %v1503, 0
        %v1514 = vsel %vm775, %v1504, 0
        %v1517 = vsel %vm822, %v1508, 0
        %1519 = vmatprep.subr.bf16.mxu0 0
        %1520 = vmatpush1.bf16.msra.mxu0 %v1506
        %1521 = vmatprep.subr.bf16.mxu0 0
        %1522 = vmatpush1.bf16.msra.mxu0 %v1517
        %1523 = vmatprep.subr.bf16.mxu0 0
        %1524 = vmatpush1.bf16.msra.mxu0 0
        %1525 = vmatprep.subr.bf16.mxu0 0
        %1526 = vmatpush1.bf16.msra.mxu0 0
        %1527 = vmatprep.subr.bf16.mxu0 0
        %1528 = vmatpush1.bf16.msra.mxu0 0
        %1529 = vmatprep.subr.bf16.mxu0 0
        %1530 = vmatpush1.bf16.msra.mxu0 0
        %1531 = vmatprep.subr.bf16.mxu0 0
        %1532 = vmatpush1.bf16.msra.mxu0 0
        %1533 = vmatprep.subr.bf16.mxu0 0
        %1534 = vmatpush1.bf16.msra.mxu0 0
        %1535 = vmatprep.subr.bf16.mxu0 0
        %1536 = vmatpush1.bf16.msra.mxu0 0
        %1537 = vmatprep.subr.bf16.mxu0 0
        %1538 = vmatpush1.bf16.msra.mxu0 0
        %1539 = vmatprep.subr.bf16.mxu0 0
        %1540 = vmatpush1.bf16.msra.mxu0 0
        %1541 = vmatprep.subr.bf16.mxu0 0
        %1542 = vmatpush1.bf16.msra.mxu0 0
        %1543 = vmatprep.subr.bf16.mxu0 0
        %1544 = vmatpush1.bf16.msra.mxu0 0
        %1545 = vmatprep.subr.bf16.mxu0 0
        %1546 = vmatpush1.bf16.msra.mxu0 0
        %1547 = vmatprep.subr.bf16.mxu0 0
        %1548 = vmatpush1.bf16.msra.mxu0 0
        %1549 = vmatprep.subr.bf16.mxu0 0
        %1550 = vmatpush1.bf16.msra.mxu0 0
        %1551 = vmatprep.mubr.bf16.mxu0 0
        %1552 = vmatmul.mubr.bf16.gmra.mrb[0].mxu0 %v1511
        %v1553 = vpop.f32.mrb[0].mxu0
        %v1554 = vadd.f32 0.0, %v1553
        %v1555 = vpop.f32.mrb[0].mxu0
        %v1556 = vpop.f32.mrb[0].mxu0
        %v1557 = vadd.f32 0.0, %v1556
        %v1558 = vpop.f32.mrb[0].mxu0
        %1559 = vmatprep.mubr.bf16.mxu0 0
        %1560 = vmatmul.mubr.bf16.gmra.mrb[0].mxu0 %v1514
        %v1561 = vpop.f32.mrb[0].mxu0
        %v1562 = vadd.f32 0.0, %v1561
        %v1563 = vpop.f32.mrb[0].mxu0
        %v1564 = vpop.f32.mrb[0].mxu0
        %v1565 = vpop.f32.mrb[0].mxu0
        %1566 = vdwg.mxu0
        %v1567 = vpack.c.bf16 %v1557, %v1554
        %v1568 = vpack.c.bf16 %v1562, %v1562
        %v1570 = vsel %vm708, %v1567, 0
        %v1573 = vsel %vm708, %v1568, 0
        %v1576 = vsel %vm822, %v699, 0
        %1578 = vmatprep.subr.bf16.mxu0 0
        %1579 = vmatpush1.bf16.msra.mxu0 %v1576
        %1580 = vmatprep.subr.bf16.mxu0 0
        %1581 = vmatpush1.bf16.msra.mxu0 0
        %1582 = vmatprep.subr.bf16.mxu0 0
        %1583 = vmatpush1.bf16.msra.mxu0 0
        %1584 = vmatprep.subr.bf16.mxu0 0
        %1585 = vmatpush1.bf16.msra.mxu0 0
        %1586 = vmatprep.subr.bf16.mxu0 0
        %1587 = vmatpush1.bf16.msra.mxu0 0
        %1588 = vmatprep.subr.bf16.mxu0 0
        %1589 = vmatpush1.bf16.msra.mxu0 0
        %1590 = vmatprep.subr.bf16.mxu0 0
        %1591 = vmatpush1.bf16.msra.mxu0 0
        %1592 = vmatprep.subr.bf16.mxu0 0
        %1593 = vmatpush1.bf16.msra.mxu0 0
        %1594 = vmatprep.subr.bf16.mxu0 0
        %1595 = vmatpush1.bf16.msra.mxu0 0
        %1596 = vmatprep.subr.bf16.mxu0 0
        %1597 = vmatpush1.bf16.msra.mxu0 0
        %1598 = vmatprep.subr.bf16.mxu0 0
        %1599 = vmatpush1.bf16.msra.mxu0 0
        %1600 = vmatprep.subr.bf16.mxu0 0
        %1601 = vmatpush1.bf16.msra.mxu0 0
        %1602 = vmatprep.subr.bf16.mxu0 0
        %1603 = vmatpush1.bf16.msra.mxu0 0
        %1604 = vmatprep.subr.bf16.mxu0 0
        %1605 = vmatpush1.bf16.msra.mxu0 0
        %1606 = vmatprep.subr.bf16.mxu0 0
        %1607 = vmatpush1.bf16.msra.mxu0 0
        %1608 = vmatprep.subr.bf16.mxu0 0
        %1609 = vmatpush1.bf16.msra.mxu0 0
        %1610 = vmatprep.mubr.bf16.mxu0 0
        %1611 = vmatmul.mubr.bf16.gmra.mrb[0].mxu0 %v1570
        %v1612 = vpop.f32.mrb[0].mxu0
        %v1613 = vadd.f32 0.0, %v1612
        %v1614 = vpop.f32.mrb[0].mxu0
        %v1615 = vpop.f32.mrb[0].mxu0
        %v1616 = vadd.f32 0.0, %v1615
        %v1617 = vpop.f32.mrb[0].mxu0
        %1618 = vmatprep.mubr.bf16.mxu0 0
        %1619 = vmatmul.mubr.bf16.gmra.mrb[0].mxu0 %v1573
        %v1620 = vpop.f32.mrb[0].mxu0
        %v1621 = vadd.f32 0.0, %v1620
        %v1622 = vpop.f32.mrb[0].mxu0
        %v1623 = vpop.f32.mrb[0].mxu0
        %v1624 = vpop.f32.mrb[0].mxu0
        %1625 = vdwg.mxu0
        %v1626 = vadd.f32 %v1393, %v1613
        %v1627 = vadd.f32 %v1394, %v1616
        %v1628 = vadd.f32 %v1395, %v1621
        %v1629 = vadd.f32 %v534, %v1626
        %v1630 = vadd.f32 %v535, %v1627
        %v1631 = vadd.f32 %v536, %v1628
        %v1632 = vld [vmem:[%s501] sm:$0x1]
        %v1634 = vlaneseq
        %v1635 = vshrl.u32 %v1634, 7
        %v1636 = vsub.s32 0, %v1635
        %v1637 = vrot.slane %v1632, %v1636
        %v1639 = vadd.f32 %v1629, %v1637
        %v1640 = vadd.f32 %v1630, %v1637
        %v1641 = vadd.f32 %v1631, %v1637
        %s1642 = sadd.s32 1, %s541
        %s1643 = smul.u32 %s1642, 128
        %s1644 = sld [smem:[#allocation3 + %s1643]]
        %s1645 = sadd.s32 %s1643, 1
        %s1646 = sld [smem:[#allocation3 + %s1645]]
        %v1647 = vsel %vm546, %v1639, 0.0
        %1648 = vadd.xlane.f32.xlu0 %v1647
        %v1649 = vpop.xlane.xlu0 %1648
        %v1650 = vsel %vm546, %v1640, 0.0
        %1651 = vadd.xlane.f32.xlu0 %v1650
        %v1652 = vpop.xlane.xlu0 %1651
        %v1653 = vsel %vm546, %v1641, 0.0
        %1654 = vadd.xlane.f32.xlu0 %v1653
        %v1655 = vpop.xlane.xlu0 %1654
        %v1656 = vmul.f32 %v1649, %v556
        %v1657 = vmul.f32 %v1652, %v556
        %v1658 = vmul.f32 %v1655, %v556
        %v1659 = vsub.f32 %v1639, %v1656
        %v1660 = vsub.f32 %v1640, %v1657
        %v1661 = vsub.f32 %v1641, %v1658
        %v1662 = vmul.f32 %v1659, %v1659
        %v1663 = vmul.f32 %v1660, %v1660
        %v1664 = vmul.f32 %v1661, %v1661
        %v1665 = vsel %vm546, %v1662, 0.0
        %1666 = vadd.xlane.f32.xlu0 %v1665
        %v1667 = vpop.xlane.xlu0 %1666
        %v1668 = vsel %vm546, %v1663, 0.0
        %1669 = vadd.xlane.f32.xlu0 %v1668
        %v1670 = vpop.xlane.xlu0 %1669
        %v1671 = vsel %vm546, %v1664, 0.0
        %1672 = vadd.xlane.f32.xlu0 %v1671
        %v1673 = vpop.xlane.xlu0 %1672
        %v1674 = vmul.f32 %v1667, %v575
        %v1675 = vmul.f32 %v1670, %v575
        %v1676 = vmul.f32 %v1673, %v575
        %v1677 = vrsqrt.pop %v1674
        %v1678 = vmul.f32 %v1674, %v1677
        %vm1679 = vcmp.eq.f32.partialorder %v1674, inf
        %v1680 = vsel %vm1679, %v1674, %v1678
        %vm1681 = vcmp.eq.f32.partialorder %v1674, 0.0
        %v1682 = vand.u32 %v1674, 2147483648
        %v1683 = vsel %vm1681, %v1682, %v1680
        %v1684 = vrsqrt.pop %v1675
        %v1685 = vmul.f32 %v1675, %v1684
        %vm1686 = vcmp.eq.f32.partialorder %v1675, inf
        %v1687 = vsel %vm1686, %v1675, %v1685
        %vm1688 = vcmp.eq.f32.partialorder %v1675, 0.0
        %v1689 = vand.u32 %v1675, 2147483648
        %v1690 = vsel %vm1688, %v1689, %v1687
        %v1691 = vrsqrt.pop %v1676
        %v1692 = vmul.f32 %v1676, %v1691
        %vm1693 = vcmp.eq.f32.partialorder %v1676, inf
        %v1694 = vsel %vm1693, %v1676, %v1692
        %vm1695 = vcmp.eq.f32.partialorder %v1676, 0.0
        %v1696 = vand.u32 %v1676, 2147483648
        %v1697 = vsel %vm1695, %v1696, %v1694
        %v1698 = vadd.f32 %v1683, 1e-06
        %v1699 = vadd.f32 %v1690, 1e-06
        %v1700 = vadd.f32 %v1697, 1e-06
        %v1701 = vrcp.pop %v1698
        %v1702 = vrcp.pop %v1699
        %v1703 = vrcp.pop %v1700
        %v1704 = vstv %s1644
        %v1705 = vmul.f32 %v1704, %v1659
        %v1706 = vmul.f32 %v1704, %v1660
        %v1707 = vmul.f32 %v1704, %v1661
        %v1708 = vmul.f32 %v1705, %v1701
        %v1709 = vmul.f32 %v1706, %v1702
        %v1710 = vmul.f32 %v1707, %v1703
        %v1711 = vstv %s1646
        %v1712 = vadd.f32 %v1708, %v1711
        %v1713 = vadd.f32 %v1709, %v1711
        %v1714 = vadd.f32 %v1710, %v1711
        %v1715 = vpack.c.bf16 %v1713, %v1712
        %v1716 = vpack.c.bf16 %v1714, %v1714
        %v1717 = vld [vmem:[%s506] sm:$0xf]
        %v1718 = vld [vmem:[%s506 + $0x4] sm:$0xf]
        %v1719 = vld [vmem:[%s506 + $0x8] sm:$0xf]
        %v1720 = vld [vmem:[%s506 + $0xc] sm:$0xf]
        %v1721 = vld [vmem:[%s509] sm:$0x1]
        %v1723 = vlaneseq
        %v1724 = vshrl.u32 %v1723, 7
        %v1725 = vsub.s32 0, %v1724
        %v1726 = vrot.slane %v1721, %v1725
        %v1732 = vunpack.c.l.b16 %v1717
        %v1733 = vunpack.c.l.b16 %v1718
        %v1734 = vunpack.c.l.b16 %v1719
        %v1735 = vunpack.c.l.b16 %v1720
        %v1736 = vpack.c.b16 %v1733, %v1732
        %v1737 = vpack.c.b16 %v1735, %v1734
        %v1741 = vsel %vm546, %v1715, 0
        %v1744 = vsel %vm546, %v1716, 0
        %1746 = vmatprep.subr.bf16.mxu0 0
        %1747 = vmatpush1.bf16.msra.mxu0 %v1736
        %1748 = vmatprep.subr.bf16.mxu0 0
        %1749 = vmatpush1.bf16.msra.mxu0 %v1737
        %1750 = vmatprep.subr.bf16.mxu0 0
        %1751 = vmatpush1.bf16.msra.mxu0 0
        %1752 = vmatprep.subr.bf16.mxu0 0
        %1753 = vmatpush1.bf16.msra.mxu0 0
        %1754 = vmatprep.subr.bf16.mxu0 0
        %1755 = vmatpush1.bf16.msra.mxu0 0
        %1756 = vmatprep.subr.bf16.mxu0 0
        %1757 = vmatpush1.bf16.msra.mxu0 0
        %1758 = vmatprep.subr.bf16.mxu0 0
        %1759 = vmatpush1.bf16.msra.mxu0 0
        %1760 = vmatprep.subr.bf16.mxu0 0
        %1761 = vmatpush1.bf16.msra.mxu0 0
        %1762 = vmatprep.subr.bf16.mxu0 0
        %1763 = vmatpush1.bf16.msra.mxu0 0
        %1764 = vmatprep.subr.bf16.mxu0 0
        %1765 = vmatpush1.bf16.msra.mxu0 0
        %1766 = vmatprep.subr.bf16.mxu0 0
        %1767 = vmatpush1.bf16.msra.mxu0 0
        %1768 = vmatprep.subr.bf16.mxu0 0
        %1769 = vmatpush1.bf16.msra.mxu0 0
        %1770 = vmatprep.subr.bf16.mxu0 0
        %1771 = vmatpush1.bf16.msra.mxu0 0
        %1772 = vmatprep.subr.bf16.mxu0 0
        %1773 = vmatpush1.bf16.msra.mxu0 0
        %1774 = vmatprep.subr.bf16.mxu0 0
        %1775 = vmatpush1.bf16.msra.mxu0 0
        %1776 = vmatprep.subr.bf16.mxu0 0
        %1777 = vmatpush1.bf16.msra.mxu0 0
        %1778 = vmatprep.mubr.bf16.mxu0 0
        %1779 = vmatmul.mubr.bf16.gmra.mrb[0].mxu0 %v1741
        %v1780 = vpop.f32.mrb[0].mxu0
        %v1781 = vadd.f32 %v1726, %v1780
        %v1782 = vpop.f32.mrb[0].mxu0
        %v1783 = vpop.f32.mrb[0].mxu0
        %v1784 = vadd.f32 %v1726, %v1783
        %v1785 = vpop.f32.mrb[0].mxu0
        %1786 = vmatprep.mubr.bf16.mxu0 0
        %1787 = vmatmul.mubr.bf16.gmra.mrb[0].mxu0 %v1744
        %v1788 = vpop.f32.mrb[0].mxu0
        %v1789 = vadd.f32 %v1726, %v1788
        %v1790 = vpop.f32.mrb[0].mxu0
        %v1791 = vpop.f32.mrb[0].mxu0
        %v1792 = vpop.f32.mrb[0].mxu0
        %1793 = vdwg.mxu0
        %v1794 = vmax.f32 %v1781, 0.0
        %v1795 = vmax.f32 %v1784, 0.0
        %v1796 = vmax.f32 %v1789, 0.0
        %v1797 = vpack.c.bf16 %v1795, %v1794
        %v1798 = vpack.c.bf16 %v1796, %v1796
        %v1799 = vld [vmem:[%s514] sm:$0xf]
        %v1800 = vld [vmem:[%s514 + $0x4] sm:$0xf]
        %v1801 = vld [vmem:[%s514 + $0x8] sm:$0xf]
        %v1802 = vld [vmem:[%s514 + $0xc] sm:$0xf]
        %v1803 = vld [vmem:[%s514 + $0x10] sm:$0xf]
        %v1804 = vld [vmem:[%s514 + $0x14] sm:$0xf]
        %v1805 = vld [vmem:[%s514 + $0x18] sm:$0xf]
        %v1806 = vld [vmem:[%s514 + $0x1c] sm:$0xf]
        %v1807 = vld [vmem:[%s517] sm:$0x1]
        %v1809 = vlaneseq
        %v1810 = vshrl.u32 %v1809, 7
        %v1811 = vsub.s32 0, %v1810
        %v1812 = vrot.slane %v1807, %v1811
        %v1822 = vunpack.c.l.b16 %v1799
        %v1823 = vunpack.c.l.b16 %v1800
        %v1824 = vunpack.c.l.b16 %v1801
        %v1825 = vunpack.c.l.b16 %v1802
        %v1826 = vunpack.c.l.b16 %v1803
        %v1827 = vunpack.c.l.b16 %v1804
        %v1828 = vunpack.c.l.b16 %v1805
        %v1829 = vunpack.c.l.b16 %v1806
        %v1830 = vpack.c.b16 %v1823, %v1822
        %v1831 = vpack.c.b16 %v1825, %v1824
        %v1832 = vpack.c.b16 %v1827, %v1826
        %v1833 = vpack.c.b16 %v1829, %v1828
        %vm1838 = vcmask 523264
        %v1840 = vsel %vm1838, %v1797, 0
        %v1843 = vsel %vm1838, %v1798, 0
        %1845 = vmatprep.subr.bf16.mxu0 0
        %1846 = vmatpush1.bf16.msra.mxu0 %v1830
        %1847 = vmatprep.subr.bf16.mxu0 0
        %1848 = vmatpush1.bf16.msra.mxu0 %v1831
        %1849 = vmatprep.subr.bf16.mxu0 0
        %1850 = vmatpush1.bf16.msra.mxu0 %v1832
        %1851 = vmatprep.subr.bf16.mxu0 0
        %1852 = vmatpush1.bf16.msra.mxu0 %v1833
        %1853 = vmatprep.subr.bf16.mxu0 0
        %1854 = vmatpush1.bf16.msra.mxu0 0
        %1855 = vmatprep.subr.bf16.mxu0 0
        %1856 = vmatpush1.bf16.msra.mxu0 0
        %1857 = vmatprep.subr.bf16.mxu0 0
        %1858 = vmatpush1.bf16.msra.mxu0 0
        %1859 = vmatprep.subr.bf16.mxu0 0
        %1860 = vmatpush1.bf16.msra.mxu0 0
        %1861 = vmatprep.subr.bf16.mxu0 0
        %1862 = vmatpush1.bf16.msra.mxu0 0
        %1863 = vmatprep.subr.bf16.mxu0 0
        %1864 = vmatpush1.bf16.msra.mxu0 0
        %1865 = vmatprep.subr.bf16.mxu0 0
        %1866 = vmatpush1.bf16.msra.mxu0 0
        %1867 = vmatprep.subr.bf16.mxu0 0
        %1868 = vmatpush1.bf16.msra.mxu0 0
        %1869 = vmatprep.subr.bf16.mxu0 0
        %1870 = vmatpush1.bf16.msra.mxu0 0
        %1871 = vmatprep.subr.bf16.mxu0 0
        %1872 = vmatpush1.bf16.msra.mxu0 0
        %1873 = vmatprep.subr.bf16.mxu0 0
        %1874 = vmatpush1.bf16.msra.mxu0 0
        %1875 = vmatprep.subr.bf16.mxu0 0
        %1876 = vmatpush1.bf16.msra.mxu0 0
        %1877 = vmatprep.mubr.bf16.mxu0 0
        %1878 = vmatmul.mubr.bf16.gmra.mrb[0].mxu0 %v1840
        %v1879 = vpop.f32.mrb[0].mxu0
        %v1880 = vadd.f32 %v1812, %v1879
        %v1881 = vpop.f32.mrb[0].mxu0
        %v1882 = vpop.f32.mrb[0].mxu0
        %v1883 = vadd.f32 %v1812, %v1882
        %v1884 = vpop.f32.mrb[0].mxu0
        %1885 = vmatprep.mubr.bf16.mxu0 0
        %1886 = vmatmul.mubr.bf16.gmra.mrb[0].mxu0 %v1843
        %v1887 = vpop.f32.mrb[0].mxu0
        %v1888 = vadd.f32 %v1812, %v1887
        %v1889 = vpop.f32.mrb[0].mxu0
        %v1890 = vpop.f32.mrb[0].mxu0
        %v1891 = vpop.f32.mrb[0].mxu0
        %1892 = vdwg.mxu0
        %v1893 = vadd.f32 %v1639, %v1880
        %v1894 = vadd.f32 %v1640, %v1883
        %v1895 = vadd.f32 %v1641, %v1888
        %1896 = vst.msk [vmem:[#allocation2] sm:$0xff] %vm546, %v1893
        %1897 = vst.msk [vmem:[#allocation2 + $0x8] sm:$0xff] %vm546, %v1894
        %1898 = vst.msk [vmem:[#allocation2 + $0x10] sm:$0xff] %vm546, %v1895
        %p1899 = scmp.eq.s32.totalorder %s27, 1
        // Predicated region
        $region69: #{vit_forward.4} parent=59 // pred_check
          %p1900 = pneg %p1899
        $region70: #{vit_forward.4} parent=59 // pred_check_branch
          %1902 = sbr.rel (%p1900) target = $region72
        $region71: #{vit_forward.4} parent=59 // pred_region
          %1903 = vst.msk [vmem:[%s521] sm:$0xff] %vm546, %v1893
        $region72: #{vit_forward.4} parent=59 // pred_fallthru
          _
        %p1904 = scmp.lt.s32.totalorder %s26, 1
        %s1905 = scalar_select %p1904, %s26, 1
        %s1906 = smul.addr %s1905, 8
        %s1907 = scalar_lea.vmem %s10, %s1906
        // Predicated region
        $region73: #{vit_forward.4} parent=59 // pred_check
          %p1908 = pneg %p307
        $region74: #{vit_forward.4} parent=59 // pred_check_branch
          %1910 = sbr.rel (%p1908) target = $region76
        $region75: #{vit_forward.4} parent=59 // pred_region
          _
        $region76: #{vit_forward.4} parent=59 // pred_fallthru
          _
      $region60: #{vit_forward.4} parent=5 // pred_fallthru
        _
      %p1911 = scmp.le.s32.totalorder 2, %s17
      // Predicated region
      $region77: #{vit_forward.4} parent=5 // pred_check
        %p1912 = pneg %p1911
      $region78: #{vit_forward.4} parent=5 // pred_check_branch
        %1914 = sbr.rel (%p1912) target = $region80
      $region79: #{vit_forward.4} parent=5 // pred_region
        %s1915 = ssub.s32 %s17, 2
        // Predicated region
        $region81: #{vit_forward.4} parent=79 // pred_check
          %p1916 = pneg %p313
        $region82: #{vit_forward.4} parent=79 // pred_check_branch
          %1918 = sbr.rel (%p1916) target = $region84
        $region83: #{vit_forward.4} parent=79 // pred_region
          %p1919 = scmp.lt.s32.totalorder %s28, 1
          %s1920 = scalar_select %p1919, %s28, 1
          %s1921 = smul.addr %s1920, 8
          %s1922 = scalar_lea.vmem %s10, %s1921
        $region84: #{vit_forward.4} parent=79 // pred_fallthru
          _
      $region80: #{vit_forward.4} parent=5 // pred_fallthru
        _
    $region6: #{vit_forward.4} parent=1 // loop_footer
      %s21 = sadd.s32 1, %s17
    $region7: #{vit_forward.4} parent=1 // loop_footer_branch
      %16 = sbr.rel target = $region3
    $region8: #{vit_forward.4} parent=1 // loop_exit
      _
    %1923 = vsyncpa [#allocation4], 1
    %s1924 = scalar_lea.sflag [#allocation4], 1
    %1925 = vsyncpa %s1924, 1

</llo_original>
